<compile_context>
chip_gen: v6e
topology: v6e:2x2x1
jax: 0.10.0
libtpu: 0.0.40
codegen_flags: <defaults>
</compile_context>

<pallas_src>
import numpy as np
import jax
import jax.numpy as jnp
from jax.experimental import pallas as pl
from jax.experimental.pallas import tpu as pltpu


# --------------------------------------------------------------------------- #
# Kernel
# --------------------------------------------------------------------------- #
def _make_kernel(H, hd, gh, G, gc, TB, Np, C, has_mask, approx_reciprocal):
    """H heads of dim hd, split into G groups of gh heads (gc = gh*hd cols)."""

    def kernel(*refs):
        if has_mask:
            (x_ref, mask_ref, wqkv_ref, bqkv_ref, bias_ref,
             wp_ref, bp_ref, o_ref) = refs
        else:
            x_ref, wqkv_ref, bqkv_ref, bias_ref, wp_ref, bp_ref, o_ref = refs
            mask_ref = None

        # f32 block load, bf16 cast on the VPU (hides under MXU work)
        x2d = x_ref[...].astype(jnp.bfloat16)                 # (TB*Np, C)
        mask_b = mask_ref[...] if has_mask else None          # (TB, Np, Np) f32

        acc = None                                            # (TB*Np, C) f32
        for g in range(G):
            c0 = 3 * gc * g
            # ---- per-group fused QKV projection: (TB*Np, C) @ (C, 3*gc) ----
            qkv_g = jnp.dot(x2d, wqkv_ref[:, c0:c0 + 3 * gc],
                            preferred_element_type=jnp.float32)
            qkv_g = (qkv_g + bqkv_ref[:, c0:c0 + 3 * gc]).astype(jnp.bfloat16)

            outs = []
            for hh in range(gh):
                h = g * gh + hh
                q = qkv_g[:, hh * hd:(hh + 1) * hd].reshape(TB, Np, hd)
                k = qkv_g[:, gc + hh * hd:gc + (hh + 1) * hd].reshape(TB, Np, hd)
                v = qkv_g[:, 2 * gc + hh * hd:2 * gc + (hh + 1) * hd].reshape(TB, Np, hd)
                # contract last dims directly -> no materialized k transpose
                s = jnp.einsum("tnd,tmd->tnm", q, k,
                               preferred_element_type=jnp.float32)  # (TB,Np,Np)
                s = s + bias_ref[h]                                 # (Np, Np)
                if mask_b is not None:
                    s = s + mask_b
                s = s - jnp.max(s, axis=-1, keepdims=True)
                # TODO(synk): on v6e/v7x a bf16 exp would double EUP throughput;
                # kept f32 for v5e compatibility and closer reference parity.
                p = jnp.exp(s)
                denom = jnp.sum(p, axis=-1, keepdims=True)
                if approx_reciprocal:
                    p = p * pl.reciprocal(denom, approx=True)       # EUP
                else:
                    p = p / denom
                o_h = jnp.einsum("tnm,tmd->tnd", p.astype(jnp.bfloat16), v,
                                 preferred_element_type=jnp.float32)
                outs.append(o_h.astype(jnp.bfloat16).reshape(TB * Np, hd))

            # group-local assembly gives a ~128-lane tile; project + accumulate
            cat_g = outs[0] if gh == 1 else jnp.concatenate(outs, axis=-1)
            contrib = jnp.dot(cat_g, wp_ref[g * gc:(g + 1) * gc, :],
                              preferred_element_type=jnp.float32)
            acc = contrib if acc is None else acc + contrib

        out = acc + bp_ref[...]                                # (1, C) bias
        # TODO(synk): attn_drop / proj_drop are identity for p=0.0 (module default)
        o_ref[...] = out.astype(o_ref.dtype)

    return kernel


# --------------------------------------------------------------------------- #
# VMEM-aware tiling decisions
# --------------------------------------------------------------------------- #
def _vmem_budget_and_limit():
    """Working-set budget for TB selection + scoped vmem limit, per generation."""
    try:
        cap = int(pltpu.get_tpu_info().vmem_capacity_bytes)
    except Exception:
        cap = 64 << 20  # conservative fallback (v7x-sized per-core VMEM)
    budget = min(int(cap * 0.45), 64 << 20)
    limit = min(int(cap * 0.75), 100 << 20)
    return budget, limit


def _estimate_vmem_bytes(tb, n, c, h, hd, gc, mask_kind):
    """Rough upper bound on live VMEM for one grid step."""
    f32, bf16 = 4, 2
    tbn = tb * n
    io = 2 * (tbn * c * f32) * 2                    # x + out blocks, double-buffered
    resid = (3 * c * c * bf16 + 3 * c * f32         # Wqkv, bqkv
             + h * n * n * f32                      # relative-position bias
             + c * c * bf16 + c * f32)              # Wp, bp
    if mask_kind == "resident":
        resid += tb * n * n * f32
    elif mask_kind == "sliced":
        resid += 2 * tb * n * n * f32
    gh = gc // hd
    interm = (tbn * c * bf16                        # x cast to bf16
              + tbn * 3 * gc * (f32 + bf16)         # per-group qkv (f32 + bf16)
              + 3 * tb * n * n * f32                # scores / softmax temps
              + tb * n * n * bf16                   # p cast for PV
              + gh * tbn * hd * bf16                # per-head outputs
              + tbn * gc * bf16                     # group assembly
              + tbn * c * f32)                      # output accumulator
    return io + resid + interm


def _choose_tb(B_, n, c, h, hd, gc, nW, budget, max_tb=64):
    """Largest window-batch TB that divides B_, fits the VMEM budget, is
    compatible with the (b % nW) shift-mask layout, and leaves >= 2 grid steps
    (preferably an even count, for v7x's two TensorCores)."""
    cands = [tb for tb in range(1, min(B_, max_tb) + 1) if B_ % tb == 0]
    if nW is not None:
        cands = [tb for tb in cands if tb % nW == 0 or nW % tb == 0]

    def kind(tb):
        if nW is None:
            return None
        return "resident" if tb % nW == 0 else "sliced"

    fitting = [tb for tb in cands
               if _estimate_vmem_bytes(tb, n, c, h, hd, gc, kind(tb)) <= budget]
    if not fitting:
        fitting = [min(cands)]
    multi = [tb for tb in fitting if B_ // tb >= 2]
    pool = multi if multi else fitting
    best = max(pool)
    even = [tb for tb in pool if (B_ // tb) % 2 == 0 and 2 * tb >= best]
    return max(even) if even else best


def _resident_spec(shape):
    """Constant-index (grid-invariant) BlockSpec, single-buffered when supported."""
    nd = len(shape)
    index_map = lambda g: (0,) * nd
    try:
        return pl.BlockSpec(shape, index_map, pipeline_mode=pl.Buffered(1))
    except Exception:
        return pl.BlockSpec(shape, index_map)


# --------------------------------------------------------------------------- #
# One-time weight relayout (call once, reuse across forward calls)
# --------------------------------------------------------------------------- #
def prepare_window_attention(params):
    H = params["num_heads"]
    idx = params["rel_index"]
    N = int(idx.shape[0])
    C = int(params["w_qkv"].shape[1])
    hd = C // H
    assert H * hd == C
    scale = params["scale"]

    # head-group size: ~128 lanes per group, must divide H
    gh = max(1, min(H, 128 // max(hd, 1)))
    while H % gh:
        gh -= 1
    G = H // gh
    gc = gh * hd

    # pad token count to a bf16 sublane-friendly multiple of 16 (e.g. 49 -> 64)
    Np = -(-N // 16) * 16

    # y = x @ W.T -> right-multipliers; fold the qk scale into the q columns
    wq = params["w_qkv"].T.astype(jnp.float32)                  # (C, 3C)
    bq = params["b_qkv"].astype(jnp.float32)                    # (3C,)
    col_scale = jnp.concatenate([jnp.full((C,), scale, jnp.float32),
                                 jnp.ones((2 * C,), jnp.float32)])
    wq = wq * col_scale[None, :]
    bq = bq * col_scale

    # group-reorder columns: [q_g | k_g | v_g] per head-group so each group's
    # projection is a contiguous (C, 3*gc) slab (static, 128-lane-aligned slices)
    wparts, bparts = [], []
    for g in range(G):
        for blk in range(3):
            lo = blk * C + g * gc
            wparts.append(wq[:, lo:lo + gc])
            bparts.append(bq[lo:lo + gc])
    wqkv = jnp.concatenate(wparts, axis=1).astype(jnp.bfloat16)  # (C, 3C) bf16
    bqkv = jnp.concatenate(bparts).reshape(1, 3 * C)             # (1, 3C) f32

    wp = params["w_proj"].T.astype(jnp.bfloat16)                 # (C, C) bf16
    bp = params["b_proj"].astype(jnp.float32).reshape(1, C)      # (1, C) f32

    # relative position bias gather: (H, N, N) f32, padded to (H, Np, Np) with
    # padded key columns blocked by a large negative (so softmax ignores them)
    bias = params["rel_bias_table"][idx.reshape(-1)]
    bias = bias.reshape(N, N, H).transpose(2, 0, 1).astype(jnp.float32)
    if Np != N:
        bias = jnp.pad(bias, ((0, 0), (0, Np - N), (0, Np - N)))
        key_neg = jnp.where(jnp.arange(Np) < N, 0.0, -1e9).astype(jnp.float32)
        bias = bias + key_neg[None, None, :]

    return dict(H=H, hd=hd, gh=gh, G=G, gc=gc, N=N, Np=Np, C=C,
                wqkv=wqkv, bqkv=bqkv, bias=bias, wp=wp, bp=bp)


# --------------------------------------------------------------------------- #
# Forward wrapper
# --------------------------------------------------------------------------- #
def window_attention_pallas(x, prep, mask=None, approx_reciprocal=True):
    """x: (B_, N, C) float32.  mask: (nW, N, N) additive mask (0 / -100) or None.
    prep: output of prepare_window_attention(params)."""
    B_, N, C = x.shape
    assert N == prep["N"] and C == prep["C"]
    H, hd, gh, G, gc, Np = (prep[k] for k in ("H", "hd", "gh", "G", "gc", "Np"))

    budget, vmem_limit = _vmem_budget_and_limit()

    nW = None
    if mask is not None:
        nW = mask.shape[0]
        # window_partition layout contract: B_ = B * nW with the window index
        # being the fastest-varying factor (window b gets mask[b % nW]).
        assert B_ % nW == 0, "B_ must be a multiple of nW (num_windows * B layout)"

    TB = _choose_tb(B_, Np, C, H, hd, gc, nW, budget)
    grid = (B_ // TB,)

    # pad token axis (padded key columns already blocked in the bias)
    if Np != N:
        x = jnp.pad(x, ((0, 0), (0, Np - N), (0, 0)))
    # 2-D lane-dense layout; kernel casts f32 -> bf16 itself (no wrapper cast)
    x2d = x.reshape(B_ * Np, C)

    x_spec = pl.BlockSpec((TB * Np, C), lambda g: (g, 0))
    o_spec = pl.BlockSpec((TB * Np, C), lambda g: (g, 0))
    wqkv_spec = _resident_spec((C, 3 * C))
    bqkv_spec = _resident_spec((1, 3 * C))
    bias_spec = _resident_spec((H, Np, Np))
    wp_spec = _resident_spec((C, C))
    bp_spec = _resident_spec((1, C))

    inputs = [x2d]
    in_specs = [x_spec]
    if mask is not None:
        mask_f = mask.astype(jnp.float32)
        if Np != N:
            mask_f = jnp.pad(mask_f, ((0, 0), (0, Np - N), (0, Np - N)))
        if TB % nW == 0:
            # pre-tile once in the wrapper -> VMEM-resident, no per-step concat
            reps = TB // nW
            mask_arr = jnp.tile(mask_f, (reps, 1, 1)) if reps > 1 else mask_f
            mask_spec = _resident_spec((TB, Np, Np))
        else:
            # nW % TB == 0: per-step (TB, Np, Np) slice of the mask
            n_blk = nW // TB
            mask_arr = mask_f
            mask_spec = pl.BlockSpec((TB, Np, Np), lambda g: (g % n_blk, 0, 0))
        inputs.append(mask_arr)
        in_specs.append(mask_spec)

    inputs += [prep["wqkv"], prep["bqkv"], prep["bias"], prep["wp"], prep["bp"]]
    in_specs += [wqkv_spec, bqkv_spec, bias_spec, wp_spec, bp_spec]

    kernel = _make_kernel(H, hd, gh, G, gc, TB, Np, C,
                          has_mask=(mask is not None),
                          approx_reciprocal=approx_reciprocal)

    # TODO(synk): if the downstream consumer accepts bf16, out_shape could be
    # bf16 to halve the output writeback; kept at x.dtype for module parity.
    out2d = pl.pallas_call(
        kernel,
        out_shape=jax.ShapeDtypeStruct((B_ * Np, C), x.dtype),
        grid_spec=pltpu.PrefetchScalarGridSpec(
            num_scalar_prefetch=0,
            grid=grid,
            in_specs=in_specs,
            out_specs=o_spec,
        ),
        compiler_params=pltpu.CompilerParams(
            dimension_semantics=("parallel",),
            vmem_limit_bytes=vmem_limit),
    )(*inputs)

    out = out2d.reshape(B_, Np, C)
    if Np != N:
        out = out[:, :N, :]
    return out


# --------------------------------------------------------------------------- #
# Pure-JAX f32 reference (mirrors the PyTorch forward line by line)
# --------------------------------------------------------------------------- #
def window_attention_ref(x, params, mask=None):
    B_, N, C = x.shape
    H = params["num_heads"]
    hd = C // H
    scale = params["scale"]

    qkv = x @ params["w_qkv"].T + params["b_qkv"]            # (B_, N, 3C)
    qkv = qkv.reshape(B_, N, 3, H, hd).transpose(2, 0, 3, 1, 4)
    q, k, v = qkv[0], qkv[1], qkv[2]                         # (B_, H, N, hd)
    q = q * scale
    attn = jnp.einsum("bhnd,bhmd->bhnm", q, k)               # (B_, H, N, N)

    bias = params["rel_bias_table"][params["rel_index"].reshape(-1)]
    bias = bias.reshape(N, N, H).transpose(2, 0, 1)          # (H, N, N)
    attn = attn + bias[None]

    if mask is not None:
        nW = mask.shape[0]
        attn = attn.reshape(B_ // nW, nW, H, N, N) + mask[None, :, None]
        attn = attn.reshape(-1, H, N, N)
    attn = jax.nn.softmax(attn, axis=-1)

    out = jnp.einsum("bhnm,bhmd->bhnd", attn, v)             # (B_, H, N, hd)
    out = out.transpose(0, 2, 1, 3).reshape(B_, N, C)
    out = out @ params["w_proj"].T + params["b_proj"]
    return out


def make_params(key, dim, window_size, num_heads):
    Wh, Ww = window_size
    hd = dim // num_heads
    k1, k2, k3, k4, k5 = jax.random.split(key, 5)
    params = {
        "num_heads": num_heads,
        "scale": hd ** (-0.5),
        "w_qkv": jax.random.normal(k1, (3 * dim, dim), jnp.float32) * 0.02,
        "b_qkv": jax.random.normal(k2, (3 * dim,), jnp.float32) * 0.02,
        "w_proj": jax.random.normal(k3, (dim, dim), jnp.float32) * 0.02,
        "b_proj": jax.random.normal(k4, (dim,), jnp.float32) * 0.02,
        "rel_bias_table": jax.random.normal(
            k5, ((2 * Wh - 1) * (2 * Ww - 1), num_heads), jnp.float32) * 0.02,
    }
    # relative_position_index (same recipe as the PyTorch __init__)
    coords_h = np.arange(Wh)
    coords_w = np.arange(Ww)
    coords = np.stack(np.meshgrid(coords_h, coords_w, indexing="ij"))   # (2, Wh, Ww)
    coords_flatten = coords.reshape(2, -1)                              # (2, N)
    rel = coords_flatten[:, :, None] - coords_flatten[:, None, :]       # (2, N, N)
    rel = rel.transpose(1, 2, 0).copy()                                 # (N, N, 2)
    rel[:, :, 0] += Wh - 1
    rel[:, :, 1] += Ww - 1
    rel[:, :, 0] *= 2 * Ww - 1
    params["rel_index"] = jnp.asarray(rel.sum(-1), jnp.int32)           # (N, N)
    return params


if __name__ == "__main__":
    def run_case(dim, num_heads, window_size, B, nW, key):
        Wh, Ww = window_size
        N = Wh * Ww
        B_ = B * nW
        kp, kx, km = jax.random.split(key, 3)
        params = make_params(kp, dim, window_size, num_heads)
        prep = prepare_window_attention(params)      # one-time weight relayout
        x = jax.random.normal(kx, (B_, N, dim), jnp.float32)

        # shifted-window style additive mask: 0 where attend, -100 where blocked
        mask_bits = jax.random.bernoulli(km, 0.7, (nW, N, N))
        mask = jnp.where(mask_bits, 0.0, -100.0).astype(jnp.float32)

        out = jax.block_until_ready(window_attention_pallas(x, prep, mask=mask))
        ref = window_attention_ref(x, params, mask=mask)
        # tolerance accounts for bf16 MXU inputs + approx reciprocal in the kernel
        np.testing.assert_allclose(np.asarray(out), np.asarray(ref),
                                   rtol=5e-2, atol=2e-2)

        out_nm = jax.block_until_ready(window_attention_pallas(x, prep, mask=None))
        ref_nm = window_attention_ref(x, params, mask=None)
        np.testing.assert_allclose(np.asarray(out_nm), np.asarray(ref_nm),
                                   rtol=5e-2, atol=2e-2)

    key = jax.random.PRNGKey(0)
    k1, k2 = jax.random.split(key)
    # sublane-aligned window (N = 16)
    run_case(dim=32, num_heads=4, window_size=(4, 4), B=2, nW=4, key=k1)
    # non-aligned window (N = 9 -> padded to 16 inside the wrapper)
    run_case(dim=32, num_heads=4, window_size=(3, 3), B=2, nW=2, key=k2)

    print("KERNEL_OK")
</pallas_src>

<mosaic_0001>
module attributes {stable_mosaic.version = 11 : i64} {
  func.func @kernel(%arg0: i32, %arg1: memref<64x32xf32, #tpu.memory_space<vmem>>, %arg2: memref<4x16x16xf32, #tpu.memory_space<vmem>>, %arg3: memref<32x96xbf16, #tpu.memory_space<vmem>>, %arg4: memref<1x96xf32, #tpu.memory_space<vmem>>, %arg5: memref<4x16x16xf32, #tpu.memory_space<vmem>>, %arg6: memref<32x32xbf16, #tpu.memory_space<vmem>>, %arg7: memref<1x32xf32, #tpu.memory_space<vmem>>, %arg8: memref<64x32xf32, #tpu.memory_space<vmem>>) attributes {dimension_semantics = [#tpu.dimension_semantics<parallel>], iteration_bounds = array<i64: 2>, scalar_prefetch = 0 : i64, scratch_operands = 0 : i64, tpu.core_type = #tpu.core_type<tc>, window_params = [{transform_indices = @transform_0, window_bounds = array<i64: 64, 32>}, {pipeline_mode = #tpu.pipeline_mode<synchronous>, transform_indices = @transform_1, window_bounds = array<i64: 4, 16, 16>}, {pipeline_mode = #tpu.pipeline_mode<synchronous>, transform_indices = @transform_2, window_bounds = array<i64: 32, 96>}, {pipeline_mode = #tpu.pipeline_mode<synchronous>, transform_indices = @transform_3, window_bounds = array<i64: 1, 96>}, {pipeline_mode = #tpu.pipeline_mode<synchronous>, transform_indices = @transform_4, window_bounds = array<i64: 4, 16, 16>}, {pipeline_mode = #tpu.pipeline_mode<synchronous>, transform_indices = @transform_5, window_bounds = array<i64: 32, 32>}, {pipeline_mode = #tpu.pipeline_mode<synchronous>, transform_indices = @transform_6, window_bounds = array<i64: 1, 32>}, {transform_indices = @transform_7, window_bounds = array<i64: 64, 32>}]} {
    %c0 = arith.constant 0 : index
    %c0_0 = arith.constant 0 : index
    %0 = vector.load %arg1[%c0, %c0_0] : memref<64x32xf32, #tpu.memory_space<vmem>>, vector<64x32xf32>
    %1 = arith.truncf %0 : vector<64x32xf32> to vector<64x32xbf16>
    %c0_1 = arith.constant 0 : index
    %c0_2 = arith.constant 0 : index
    %c0_3 = arith.constant 0 : index
    %2 = vector.load %arg2[%c0_1, %c0_2, %c0_3] : memref<4x16x16xf32, #tpu.memory_space<vmem>>, vector<4x16x16xf32>
    %c0_4 = arith.constant 0 : index
    %c0_5 = arith.constant 0 : index
    %3 = vector.load %arg3[%c0_4, %c0_5] : memref<32x96xbf16, #tpu.memory_space<vmem>>, vector<32x96xbf16>
    %cst = arith.constant dense<0.000000e+00> : vector<64x96xf32>
    %4 = tpu.matmul %1, %3, %cst {dimension_numbers = #tpu.dot_dimension_numbers<[1], [0], [0], [1], [0, 0, 1, 1], [], []>} : vector<64x32xbf16>, vector<32x96xbf16>, vector<64x96xf32> -> vector<64x96xf32>
    %c0_6 = arith.constant 0 : index
    %c0_7 = arith.constant 0 : index
    %5 = vector.load %arg4[%c0_6, %c0_7] : memref<1x96xf32, #tpu.memory_space<vmem>>, vector<1x96xf32>
    %6 = vector.broadcast %5 : vector<1x96xf32> to vector<64x96xf32>
    %7 = arith.addf %4, %6 : vector<64x96xf32>
    %8 = arith.truncf %7 : vector<64x96xf32> to vector<64x96xbf16>
    %9 = vector.extract_strided_slice %8 {offsets = [0, 0], sizes = [64, 8], strides = [1, 1]} : vector<64x96xbf16> to vector<64x8xbf16>
    %10 = vector.shape_cast %9 : vector<64x8xbf16> to vector<4x16x8xbf16>
    %11 = vector.extract_strided_slice %8 {offsets = [0, 32], sizes = [64, 8], strides = [1, 1]} : vector<64x96xbf16> to vector<64x8xbf16>
    %12 = vector.shape_cast %11 : vector<64x8xbf16> to vector<4x16x8xbf16>
    %13 = vector.extract_strided_slice %8 {offsets = [0, 64], sizes = [64, 8], strides = [1, 1]} : vector<64x96xbf16> to vector<64x8xbf16>
    %14 = vector.shape_cast %13 : vector<64x8xbf16> to vector<4x16x8xbf16>
    "tpu.trace_start"() <{level = 10 : i32, message = "tnd,tmd->tnm"}> : () -> ()
    %cst_8 = arith.constant dense<0.000000e+00> : vector<4x16x16xf32>
    %15 = tpu.matmul %10, %12, %cst_8 {dimension_numbers = #tpu.dot_dimension_numbers<[2], [2], [1], [1], [0, 0, 0, 1, 1, 1], [0], [0]>} : vector<4x16x8xbf16>, vector<4x16x8xbf16>, vector<4x16x16xf32> -> vector<4x16x16xf32>
    "tpu.trace_stop"() : () -> ()
    %c0_9 = arith.constant 0 : index
    %c0_10 = arith.constant 0 : index
    %c0_11 = arith.constant 0 : index
    %16 = vector.load %arg5[%c0_9, %c0_10, %c0_11] : memref<4x16x16xf32, #tpu.memory_space<vmem>>, vector<1x16x16xf32>
    %17 = vector.shape_cast %16 : vector<1x16x16xf32> to vector<16x16xf32>
    %18 = vector.shape_cast %17 : vector<16x16xf32> to vector<1x16x16xf32>
    %19 = vector.broadcast %18 : vector<1x16x16xf32> to vector<4x16x16xf32>
    %20 = arith.addf %15, %19 : vector<4x16x16xf32>
    %21 = arith.addf %20, %2 : vector<4x16x16xf32>
    %cst_12 = arith.constant dense<0xFF800000> : vector<4x16xf32>
    %22 = vector.multi_reduction <maximumf>, %21, %cst_12 [2] : vector<4x16x16xf32> to vector<4x16xf32>
    %23 = vector.shape_cast %22 : vector<4x16xf32> to vector<4x16x1xf32>
    %24 = vector.broadcast %23 : vector<4x16x1xf32> to vector<4x16x16xf32>
    %25 = arith.subf %21, %24 : vector<4x16x16xf32>
    %26 = math.exp %25 : vector<4x16x16xf32>
    %cst_13 = arith.constant dense<0.000000e+00> : vector<4x16xf32>
    %27 = vector.multi_reduction <add>, %26, %cst_13 [2] : vector<4x16x16xf32> to vector<4x16xf32>
    %28 = vector.shape_cast %27 : vector<4x16xf32> to vector<4x16x1xf32>
    %29 = tpu.reciprocal %28 {approx = true} : vector<4x16x1xf32> -> vector<4x16x1xf32>
    %30 = vector.broadcast %29 : vector<4x16x1xf32> to vector<4x16x16xf32>
    %31 = arith.mulf %26, %30 : vector<4x16x16xf32>
    %32 = arith.truncf %31 : vector<4x16x16xf32> to vector<4x16x16xbf16>
    "tpu.trace_start"() <{level = 10 : i32, message = "tnm,tmd->tnd"}> : () -> ()
    %cst_14 = arith.constant dense<0.000000e+00> : vector<4x16x8xf32>
    %33 = tpu.matmul %32, %14, %cst_14 {dimension_numbers = #tpu.dot_dimension_numbers<[2], [1], [1], [2], [0, 0, 0, 1, 1, 2], [0], [0]>} : vector<4x16x16xbf16>, vector<4x16x8xbf16>, vector<4x16x8xf32> -> vector<4x16x8xf32>
    "tpu.trace_stop"() : () -> ()
    %34 = arith.truncf %33 : vector<4x16x8xf32> to vector<4x16x8xbf16>
    %35 = vector.shape_cast %34 : vector<4x16x8xbf16> to vector<64x8xbf16>
    %36 = vector.extract_strided_slice %8 {offsets = [0, 8], sizes = [64, 8], strides = [1, 1]} : vector<64x96xbf16> to vector<64x8xbf16>
    %37 = vector.shape_cast %36 : vector<64x8xbf16> to vector<4x16x8xbf16>
    %38 = vector.extract_strided_slice %8 {offsets = [0, 40], sizes = [64, 8], strides = [1, 1]} : vector<64x96xbf16> to vector<64x8xbf16>
    %39 = vector.shape_cast %38 : vector<64x8xbf16> to vector<4x16x8xbf16>
    %40 = vector.extract_strided_slice %8 {offsets = [0, 72], sizes = [64, 8], strides = [1, 1]} : vector<64x96xbf16> to vector<64x8xbf16>
    %41 = vector.shape_cast %40 : vector<64x8xbf16> to vector<4x16x8xbf16>
    "tpu.trace_start"() <{level = 10 : i32, message = "tnd,tmd->tnm"}> : () -> ()
    %cst_15 = arith.constant dense<0.000000e+00> : vector<4x16x16xf32>
    %42 = tpu.matmul %37, %39, %cst_15 {dimension_numbers = #tpu.dot_dimension_numbers<[2], [2], [1], [1], [0, 0, 0, 1, 1, 1], [0], [0]>} : vector<4x16x8xbf16>, vector<4x16x8xbf16>, vector<4x16x16xf32> -> vector<4x16x16xf32>
    "tpu.trace_stop"() : () -> ()
    %c1 = arith.constant 1 : index
    %c0_16 = arith.constant 0 : index
    %c0_17 = arith.constant 0 : index
    %43 = vector.load %arg5[%c1, %c0_16, %c0_17] : memref<4x16x16xf32, #tpu.memory_space<vmem>>, vector<1x16x16xf32>
    %44 = vector.shape_cast %43 : vector<1x16x16xf32> to vector<16x16xf32>
    %45 = vector.shape_cast %44 : vector<16x16xf32> to vector<1x16x16xf32>
    %46 = vector.broadcast %45 : vector<1x16x16xf32> to vector<4x16x16xf32>
    %47 = arith.addf %42, %46 : vector<4x16x16xf32>
    %48 = arith.addf %47, %2 : vector<4x16x16xf32>
    %cst_18 = arith.constant dense<0xFF800000> : vector<4x16xf32>
    %49 = vector.multi_reduction <maximumf>, %48, %cst_18 [2] : vector<4x16x16xf32> to vector<4x16xf32>
    %50 = vector.shape_cast %49 : vector<4x16xf32> to vector<4x16x1xf32>
    %51 = vector.broadcast %50 : vector<4x16x1xf32> to vector<4x16x16xf32>
    %52 = arith.subf %48, %51 : vector<4x16x16xf32>
    %53 = math.exp %52 : vector<4x16x16xf32>
    %cst_19 = arith.constant dense<0.000000e+00> : vector<4x16xf32>
    %54 = vector.multi_reduction <add>, %53, %cst_19 [2] : vector<4x16x16xf32> to vector<4x16xf32>
    %55 = vector.shape_cast %54 : vector<4x16xf32> to vector<4x16x1xf32>
    %56 = tpu.reciprocal %55 {approx = true} : vector<4x16x1xf32> -> vector<4x16x1xf32>
    %57 = vector.broadcast %56 : vector<4x16x1xf32> to vector<4x16x16xf32>
    %58 = arith.mulf %53, %57 : vector<4x16x16xf32>
    %59 = arith.truncf %58 : vector<4x16x16xf32> to vector<4x16x16xbf16>
    "tpu.trace_start"() <{level = 10 : i32, message = "tnm,tmd->tnd"}> : () -> ()
    %cst_20 = arith.constant dense<0.000000e+00> : vector<4x16x8xf32>
    %60 = tpu.matmul %59, %41, %cst_20 {dimension_numbers = #tpu.dot_dimension_numbers<[2], [1], [1], [2], [0, 0, 0, 1, 1, 2], [0], [0]>} : vector<4x16x16xbf16>, vector<4x16x8xbf16>, vector<4x16x8xf32> -> vector<4x16x8xf32>
    "tpu.trace_stop"() : () -> ()
    %61 = arith.truncf %60 : vector<4x16x8xf32> to vector<4x16x8xbf16>
    %62 = vector.shape_cast %61 : vector<4x16x8xbf16> to vector<64x8xbf16>
    %63 = vector.extract_strided_slice %8 {offsets = [0, 16], sizes = [64, 8], strides = [1, 1]} : vector<64x96xbf16> to vector<64x8xbf16>
    %64 = vector.shape_cast %63 : vector<64x8xbf16> to vector<4x16x8xbf16>
    %65 = vector.extract_strided_slice %8 {offsets = [0, 48], sizes = [64, 8], strides = [1, 1]} : vector<64x96xbf16> to vector<64x8xbf16>
    %66 = vector.shape_cast %65 : vector<64x8xbf16> to vector<4x16x8xbf16>
    %67 = vector.extract_strided_slice %8 {offsets = [0, 80], sizes = [64, 8], strides = [1, 1]} : vector<64x96xbf16> to vector<64x8xbf16>
    %68 = vector.shape_cast %67 : vector<64x8xbf16> to vector<4x16x8xbf16>
    "tpu.trace_start"() <{level = 10 : i32, message = "tnd,tmd->tnm"}> : () -> ()
    %cst_21 = arith.constant dense<0.000000e+00> : vector<4x16x16xf32>
    %69 = tpu.matmul %64, %66, %cst_21 {dimension_numbers = #tpu.dot_dimension_numbers<[2], [2], [1], [1], [0, 0, 0, 1, 1, 1], [0], [0]>} : vector<4x16x8xbf16>, vector<4x16x8xbf16>, vector<4x16x16xf32> -> vector<4x16x16xf32>
    "tpu.trace_stop"() : () -> ()
    %c2 = arith.constant 2 : index
    %c0_22 = arith.constant 0 : index
    %c0_23 = arith.constant 0 : index
    %70 = vector.load %arg5[%c2, %c0_22, %c0_23] : memref<4x16x16xf32, #tpu.memory_space<vmem>>, vector<1x16x16xf32>
    %71 = vector.shape_cast %70 : vector<1x16x16xf32> to vector<16x16xf32>
    %72 = vector.shape_cast %71 : vector<16x16xf32> to vector<1x16x16xf32>
    %73 = vector.broadcast %72 : vector<1x16x16xf32> to vector<4x16x16xf32>
    %74 = arith.addf %69, %73 : vector<4x16x16xf32>
    %75 = arith.addf %74, %2 : vector<4x16x16xf32>
    %cst_24 = arith.constant dense<0xFF800000> : vector<4x16xf32>
    %76 = vector.multi_reduction <maximumf>, %75, %cst_24 [2] : vector<4x16x16xf32> to vector<4x16xf32>
    %77 = vector.shape_cast %76 : vector<4x16xf32> to vector<4x16x1xf32>
    %78 = vector.broadcast %77 : vector<4x16x1xf32> to vector<4x16x16xf32>
    %79 = arith.subf %75, %78 : vector<4x16x16xf32>
    %80 = math.exp %79 : vector<4x16x16xf32>
    %cst_25 = arith.constant dense<0.000000e+00> : vector<4x16xf32>
    %81 = vector.multi_reduction <add>, %80, %cst_25 [2] : vector<4x16x16xf32> to vector<4x16xf32>
    %82 = vector.shape_cast %81 : vector<4x16xf32> to vector<4x16x1xf32>
    %83 = tpu.reciprocal %82 {approx = true} : vector<4x16x1xf32> -> vector<4x16x1xf32>
    %84 = vector.broadcast %83 : vector<4x16x1xf32> to vector<4x16x16xf32>
    %85 = arith.mulf %80, %84 : vector<4x16x16xf32>
    %86 = arith.truncf %85 : vector<4x16x16xf32> to vector<4x16x16xbf16>
    "tpu.trace_start"() <{level = 10 : i32, message = "tnm,tmd->tnd"}> : () -> ()
    %cst_26 = arith.constant dense<0.000000e+00> : vector<4x16x8xf32>
    %87 = tpu.matmul %86, %68, %cst_26 {dimension_numbers = #tpu.dot_dimension_numbers<[2], [1], [1], [2], [0, 0, 0, 1, 1, 2], [0], [0]>} : vector<4x16x16xbf16>, vector<4x16x8xbf16>, vector<4x16x8xf32> -> vector<4x16x8xf32>
    "tpu.trace_stop"() : () -> ()
    %88 = arith.truncf %87 : vector<4x16x8xf32> to vector<4x16x8xbf16>
    %89 = vector.shape_cast %88 : vector<4x16x8xbf16> to vector<64x8xbf16>
    %90 = vector.extract_strided_slice %8 {offsets = [0, 24], sizes = [64, 8], strides = [1, 1]} : vector<64x96xbf16> to vector<64x8xbf16>
    %91 = vector.shape_cast %90 : vector<64x8xbf16> to vector<4x16x8xbf16>
    %92 = vector.extract_strided_slice %8 {offsets = [0, 56], sizes = [64, 8], strides = [1, 1]} : vector<64x96xbf16> to vector<64x8xbf16>
    %93 = vector.shape_cast %92 : vector<64x8xbf16> to vector<4x16x8xbf16>
    %94 = vector.extract_strided_slice %8 {offsets = [0, 88], sizes = [64, 8], strides = [1, 1]} : vector<64x96xbf16> to vector<64x8xbf16>
    %95 = vector.shape_cast %94 : vector<64x8xbf16> to vector<4x16x8xbf16>
    "tpu.trace_start"() <{level = 10 : i32, message = "tnd,tmd->tnm"}> : () -> ()
    %cst_27 = arith.constant dense<0.000000e+00> : vector<4x16x16xf32>
    %96 = tpu.matmul %91, %93, %cst_27 {dimension_numbers = #tpu.dot_dimension_numbers<[2], [2], [1], [1], [0, 0, 0, 1, 1, 1], [0], [0]>} : vector<4x16x8xbf16>, vector<4x16x8xbf16>, vector<4x16x16xf32> -> vector<4x16x16xf32>
    "tpu.trace_stop"() : () -> ()
    %c3 = arith.constant 3 : index
    %c0_28 = arith.constant 0 : index
    %c0_29 = arith.constant 0 : index
    %97 = vector.load %arg5[%c3, %c0_28, %c0_29] : memref<4x16x16xf32, #tpu.memory_space<vmem>>, vector<1x16x16xf32>
    %98 = vector.shape_cast %97 : vector<1x16x16xf32> to vector<16x16xf32>
    %99 = vector.shape_cast %98 : vector<16x16xf32> to vector<1x16x16xf32>
    %100 = vector.broadcast %99 : vector<1x16x16xf32> to vector<4x16x16xf32>
    %101 = arith.addf %96, %100 : vector<4x16x16xf32>
    %102 = arith.addf %101, %2 : vector<4x16x16xf32>
    %cst_30 = arith.constant dense<0xFF800000> : vector<4x16xf32>
    %103 = vector.multi_reduction <maximumf>, %102, %cst_30 [2] : vector<4x16x16xf32> to vector<4x16xf32>
    %104 = vector.shape_cast %103 : vector<4x16xf32> to vector<4x16x1xf32>
    %105 = vector.broadcast %104 : vector<4x16x1xf32> to vector<4x16x16xf32>
    %106 = arith.subf %102, %105 : vector<4x16x16xf32>
    %107 = math.exp %106 : vector<4x16x16xf32>
    %cst_31 = arith.constant dense<0.000000e+00> : vector<4x16xf32>
    %108 = vector.multi_reduction <add>, %107, %cst_31 [2] : vector<4x16x16xf32> to vector<4x16xf32>
    %109 = vector.shape_cast %108 : vector<4x16xf32> to vector<4x16x1xf32>
    %110 = tpu.reciprocal %109 {approx = true} : vector<4x16x1xf32> -> vector<4x16x1xf32>
    %111 = vector.broadcast %110 : vector<4x16x1xf32> to vector<4x16x16xf32>
    %112 = arith.mulf %107, %111 : vector<4x16x16xf32>
    %113 = arith.truncf %112 : vector<4x16x16xf32> to vector<4x16x16xbf16>
    "tpu.trace_start"() <{level = 10 : i32, message = "tnm,tmd->tnd"}> : () -> ()
    %cst_32 = arith.constant dense<0.000000e+00> : vector<4x16x8xf32>
    %114 = tpu.matmul %113, %95, %cst_32 {dimension_numbers = #tpu.dot_dimension_numbers<[2], [1], [1], [2], [0, 0, 0, 1, 1, 2], [0], [0]>} : vector<4x16x16xbf16>, vector<4x16x8xbf16>, vector<4x16x8xf32> -> vector<4x16x8xf32>
    "tpu.trace_stop"() : () -> ()
    %115 = arith.truncf %114 : vector<4x16x8xf32> to vector<4x16x8xbf16>
    %116 = vector.shape_cast %115 : vector<4x16x8xbf16> to vector<64x8xbf16>
    %117 = tpu.concatenate %35, %62, %89, %116 in 1 : vector<64x8xbf16>, vector<64x8xbf16>, vector<64x8xbf16>, vector<64x8xbf16> -> vector<64x32xbf16>
    %c0_33 = arith.constant 0 : index
    %c0_34 = arith.constant 0 : index
    %118 = vector.load %arg6[%c0_33, %c0_34] : memref<32x32xbf16, #tpu.memory_space<vmem>>, vector<32x32xbf16>
    %cst_35 = arith.constant dense<0.000000e+00> : vector<64x32xf32>
    %119 = tpu.matmul %117, %118, %cst_35 {dimension_numbers = #tpu.dot_dimension_numbers<[1], [0], [0], [1], [0, 0, 1, 1], [], []>} : vector<64x32xbf16>, vector<32x32xbf16>, vector<64x32xf32> -> vector<64x32xf32>
    %c0_36 = arith.constant 0 : index
    %c0_37 = arith.constant 0 : index
    %120 = vector.load %arg7[%c0_36, %c0_37] : memref<1x32xf32, #tpu.memory_space<vmem>>, vector<1x32xf32>
    %121 = vector.broadcast %120 : vector<1x32xf32> to vector<64x32xf32>
    %122 = arith.addf %119, %121 : vector<64x32xf32>
    %c0_38 = arith.constant 0 : index
    %c0_39 = arith.constant 0 : index
    %123 = vector.load %arg8[%c0_38, %c0_39] : memref<64x32xf32, #tpu.memory_space<vmem>>, vector<64x32xf32>
    tpu.vector_store %arg8[%c0_38, %c0_39], %122 {strides = array<i32>} : memref<64x32xf32, #tpu.memory_space<vmem>>, vector<64x32xf32>,
    return
  }
  func.func @transform_0(%arg0: i32) -> (i32, i32) {
    %c0_i32 = arith.constant 0 : i32
    %c0_i32_0 = arith.constant 0 : i32
    return %arg0, %c0_i32 : i32, i32
  }
  func.func @transform_1(%arg0: i32) -> (i32, i32, i32) {
    %c0_i32 = arith.constant 0 : i32
    %c0_i32_0 = arith.constant 0 : i32
    %c0_i32_1 = arith.constant 0 : i32
    %c0_i32_2 = arith.constant 0 : i32
    return %c0_i32, %c0_i32_0, %c0_i32_1 : i32, i32, i32
  }
  func.func @transform_2(%arg0: i32) -> (i32, i32) {
    %c0_i32 = arith.constant 0 : i32
    %c0_i32_0 = arith.constant 0 : i32
    %c0_i32_1 = arith.constant 0 : i32
    return %c0_i32, %c0_i32_0 : i32, i32
  }
  func.func @transform_3(%arg0: i32) -> (i32, i32) {
    %c0_i32 = arith.constant 0 : i32
    %c0_i32_0 = arith.constant 0 : i32
    %c0_i32_1 = arith.constant 0 : i32
    return %c0_i32, %c0_i32_0 : i32, i32
  }
  func.func @transform_4(%arg0: i32) -> (i32, i32, i32) {
    %c0_i32 = arith.constant 0 : i32
    %c0_i32_0 = arith.constant 0 : i32
    %c0_i32_1 = arith.constant 0 : i32
    %c0_i32_2 = arith.constant 0 : i32
    return %c0_i32, %c0_i32_0, %c0_i32_1 : i32, i32, i32
  }
  func.func @transform_5(%arg0: i32) -> (i32, i32) {
    %c0_i32 = arith.constant 0 : i32
    %c0_i32_0 = arith.constant 0 : i32
    %c0_i32_1 = arith.constant 0 : i32
    return %c0_i32, %c0_i32_0 : i32, i32
  }
  func.func @transform_6(%arg0: i32) -> (i32, i32) {
    %c0_i32 = arith.constant 0 : i32
    %c0_i32_0 = arith.constant 0 : i32
    %c0_i32_1 = arith.constant 0 : i32
    return %c0_i32, %c0_i32_0 : i32, i32
  }
  func.func @transform_7(%arg0: i32) -> (i32, i32) {
    %c0_i32 = arith.constant 0 : i32
    %c0_i32_0 = arith.constant 0 : i32
    return %arg0, %c0_i32 : i32, i32
  }
}

</mosaic_0001>

<llo_original>
// kernel: tpu_custom_call.1
$region0: #{tpu_custom_call.1}
  #allocation0 [shape = 'u32[]', space=smem, size = 0x4, offset = 0x4, fixed_abs, tag = 'smem constant byte address 0x4 - core index']
  #allocation1 [shape = 'u32[144,128]{1,0:T(1,128)}', space=vmem, size = 0x12000, scoped, tag = 'internal scratch']
  %s0 = inlined_call_operand.vmem [shape: f32[128,32], index: 0, kind: input, shape index: {}]
  %s1 = inlined_call_operand.vmem [shape: f32[4,16,16], index: 1, kind: input, shape index: {}]
  %s2 = inlined_call_operand.vmem [shape: bf16[32,96], index: 2, kind: input, shape index: {}]
  %s3 = inlined_call_operand.vmem [shape: f32[1,96], index: 3, kind: input, shape index: {}]
  %s4 = inlined_call_operand.vmem [shape: f32[4,16,16], index: 4, kind: input, shape index: {}]
  %s5 = inlined_call_operand.vmem [shape: bf16[32,32], index: 5, kind: input, shape index: {}]
  %s6 = inlined_call_operand.vmem [shape: f32[1,32], index: 6, kind: input, shape index: {}]
  %s7 = inlined_call_operand.vmem [shape: f32[128,32], index: 7, kind: output, shape index: {}]
  %s8 = sld [smem:[#allocation0]]
  $region61: #{tpu_custom_call.1} parent=0
    _
  %s10 = ssub.s32 1, %s8
  %s11 = scalar_select 0, %s10, %s8
  loop: start=0, step=1, limit=4
  $region2: #{tpu_custom_call.1} parent=0 // loop_pre_header
    _
  $region3: #{tpu_custom_call.1} parent=0 // loop_header
    %s13 = sphi 0, %s17
    %p14 = scmp.ge.s32.totalorder %s13, 4
    %s23 = sphi 0, %s25
    %s26 = sphi 0, %s23
    %s27 = sphi 0, %s26
    %s43 = sphi 0, %s27
    %s47 = sphi 0, %s47
    %s49 = sphi 0, %s47
    %s50 = sphi 0, %s49
    %s64 = sphi 0, %s50
    %s68 = sphi 0, %s68
    %s70 = sphi 0, %s68
    %s71 = sphi 0, %s70
    %s85 = sphi 0, %s71
    %s89 = sphi 0, %s89
    %s91 = sphi 0, %s89
    %s92 = sphi 0, %s91
    %s106 = sphi 0, %s92
    %s110 = sphi 0, %s110
    %s112 = sphi 0, %s110
    %s113 = sphi 0, %s112
    %s127 = sphi 0, %s113
    %s131 = sphi 0, %s131
    %s133 = sphi 0, %s131
    %s134 = sphi 0, %s133
    %s148 = sphi 0, %s134
    %s152 = sphi 0, %s152
    %s154 = sphi 0, %s152
    %s155 = sphi 0, %s154
    %s169 = sphi 0, %s155
    %s175 = sphi 0, %s177
    %s178 = sphi 0, %s175
    %s179 = sphi 0, %s178
    %s195 = sphi 0, %s179
  $region4: #{tpu_custom_call.1} parent=0 // loop_header_branch
    %16 = sbr.rel (%p14) target = $region8
  $region5: #{tpu_custom_call.1} parent=0 // loop_body
    %s18 = ssub.s32 %s13, 1
    %s19 = ssub.s32 %s13, 2
    %s20 = sadd.s32 %s13, 1
    %s21 = ssub.s32 %s13, %s20
    %p22 = scmp.eq.s32.totalorder %s21, 0
    %s24 = sadd.s32 %s23, 1
    %s25 = scalar_select %p22, %s23, %s24
    %p28 = pneg %p22
    %p29 = scmp.eq.s32.totalorder %s13, 1
    %p30 = por %p28, %p29
    %p31 = scmp.ne.s32.totalorder %s23, %s26
    %p32 = scmp.eq.s32.totalorder %s13, 0
    %p33 = por %p31, %p32
    %p34 = scmp.ne.s32.totalorder %s23, %s26
    %p35 = scmp.eq.s32.totalorder %s18, 1
    %p36 = por %p34, %p35
    %p37 = scmp.ne.s32.totalorder %s26, %s27
    %p38 = scmp.eq.s32.totalorder %s18, 0
    %p39 = por %p37, %p38
    %p40 = scmp.ne.s32.totalorder %s26, %s27
    %p41 = scmp.eq.s32.totalorder %s19, 1
    %p42 = por %p40, %p41
    %p44 = scmp.ne.s32.totalorder %s27, %s43
    %p45 = scmp.eq.s32.totalorder %s19, 0
    %p46 = por %p44, %p45
    %s48 = sadd.s32 %s47, 1
    %p51 = scmp.eq.s32.totalorder %s13, 1
    %p52 = scmp.ne.s32.totalorder %s47, %s49
    %p53 = scmp.eq.s32.totalorder %s13, 0
    %p54 = por %p52, %p53
    %p55 = scmp.ne.s32.totalorder %s47, %s49
    %p56 = scmp.eq.s32.totalorder %s18, 1
    %p57 = por %p55, %p56
    %p58 = scmp.ne.s32.totalorder %s49, %s50
    %p59 = scmp.eq.s32.totalorder %s18, 0
    %p60 = por %p58, %p59
    %p61 = scmp.ne.s32.totalorder %s49, %s50
    %p62 = scmp.eq.s32.totalorder %s19, 1
    %p63 = por %p61, %p62
    %p65 = scmp.ne.s32.totalorder %s50, %s64
    %p66 = scmp.eq.s32.totalorder %s19, 0
    %p67 = por %p65, %p66
    %s69 = sadd.s32 %s68, 1
    %p72 = scmp.eq.s32.totalorder %s13, 1
    %p73 = scmp.ne.s32.totalorder %s68, %s70
    %p74 = scmp.eq.s32.totalorder %s13, 0
    %p75 = por %p73, %p74
    %p76 = scmp.ne.s32.totalorder %s68, %s70
    %p77 = scmp.eq.s32.totalorder %s18, 1
    %p78 = por %p76, %p77
    %p79 = scmp.ne.s32.totalorder %s70, %s71
    %p80 = scmp.eq.s32.totalorder %s18, 0
    %p81 = por %p79, %p80
    %p82 = scmp.ne.s32.totalorder %s70, %s71
    %p83 = scmp.eq.s32.totalorder %s19, 1
    %p84 = por %p82, %p83
    %p86 = scmp.ne.s32.totalorder %s71, %s85
    %p87 = scmp.eq.s32.totalorder %s19, 0
    %p88 = por %p86, %p87
    %s90 = sadd.s32 %s89, 1
    %p93 = scmp.eq.s32.totalorder %s13, 1
    %p94 = scmp.ne.s32.totalorder %s89, %s91
    %p95 = scmp.eq.s32.totalorder %s13, 0
    %p96 = por %p94, %p95
    %p97 = scmp.ne.s32.totalorder %s89, %s91
    %p98 = scmp.eq.s32.totalorder %s18, 1
    %p99 = por %p97, %p98
    %p100 = scmp.ne.s32.totalorder %s91, %s92
    %p101 = scmp.eq.s32.totalorder %s18, 0
    %p102 = por %p100, %p101
    %p103 = scmp.ne.s32.totalorder %s91, %s92
    %p104 = scmp.eq.s32.totalorder %s19, 1
    %p105 = por %p103, %p104
    %p107 = scmp.ne.s32.totalorder %s92, %s106
    %p108 = scmp.eq.s32.totalorder %s19, 0
    %p109 = por %p107, %p108
    %s111 = sadd.s32 %s110, 1
    %p114 = scmp.eq.s32.totalorder %s13, 1
    %p115 = scmp.ne.s32.totalorder %s110, %s112
    %p116 = scmp.eq.s32.totalorder %s13, 0
    %p117 = por %p115, %p116
    %p118 = scmp.ne.s32.totalorder %s110, %s112
    %p119 = scmp.eq.s32.totalorder %s18, 1
    %p120 = por %p118, %p119
    %p121 = scmp.ne.s32.totalorder %s112, %s113
    %p122 = scmp.eq.s32.totalorder %s18, 0
    %p123 = por %p121, %p122
    %p124 = scmp.ne.s32.totalorder %s112, %s113
    %p125 = scmp.eq.s32.totalorder %s19, 1
    %p126 = por %p124, %p125
    %p128 = scmp.ne.s32.totalorder %s113, %s127
    %p129 = scmp.eq.s32.totalorder %s19, 0
    %p130 = por %p128, %p129
    %s132 = sadd.s32 %s131, 1
    %p135 = scmp.eq.s32.totalorder %s13, 1
    %p136 = scmp.ne.s32.totalorder %s131, %s133
    %p137 = scmp.eq.s32.totalorder %s13, 0
    %p138 = por %p136, %p137
    %p139 = scmp.ne.s32.totalorder %s131, %s133
    %p140 = scmp.eq.s32.totalorder %s18, 1
    %p141 = por %p139, %p140
    %p142 = scmp.ne.s32.totalorder %s133, %s134
    %p143 = scmp.eq.s32.totalorder %s18, 0
    %p144 = por %p142, %p143
    %p145 = scmp.ne.s32.totalorder %s133, %s134
    %p146 = scmp.eq.s32.totalorder %s19, 1
    %p147 = por %p145, %p146
    %p149 = scmp.ne.s32.totalorder %s134, %s148
    %p150 = scmp.eq.s32.totalorder %s19, 0
    %p151 = por %p149, %p150
    %s153 = sadd.s32 %s152, 1
    %p156 = scmp.eq.s32.totalorder %s13, 1
    %p157 = scmp.ne.s32.totalorder %s152, %s154
    %p158 = scmp.eq.s32.totalorder %s13, 0
    %p159 = por %p157, %p158
    %p160 = scmp.ne.s32.totalorder %s152, %s154
    %p161 = scmp.eq.s32.totalorder %s18, 1
    %p162 = por %p160, %p161
    %p163 = scmp.ne.s32.totalorder %s154, %s155
    %p164 = scmp.eq.s32.totalorder %s18, 0
    %p165 = por %p163, %p164
    %p166 = scmp.ne.s32.totalorder %s154, %s155
    %p167 = scmp.eq.s32.totalorder %s19, 1
    %p168 = por %p166, %p167
    %p170 = scmp.ne.s32.totalorder %s155, %s169
    %p171 = scmp.eq.s32.totalorder %s19, 0
    %p172 = por %p170, %p171
    %s173 = ssub.s32 %s13, %s20
    %p174 = scmp.eq.s32.totalorder %s173, 0
    %s176 = sadd.s32 %s175, 1
    %s177 = scalar_select %p174, %s175, %s176
    %p180 = pneg %p174
    %p181 = scmp.eq.s32.totalorder %s13, 1
    %p182 = por %p180, %p181
    %p183 = scmp.ne.s32.totalorder %s175, %s178
    %p184 = scmp.eq.s32.totalorder %s13, 0
    %p185 = por %p183, %p184
    %p186 = scmp.ne.s32.totalorder %s175, %s178
    %p187 = scmp.eq.s32.totalorder %s18, 1
    %p188 = por %p186, %p187
    %p189 = scmp.ne.s32.totalorder %s178, %s179
    %p190 = scmp.eq.s32.totalorder %s18, 0
    %p191 = por %p189, %p190
    %p192 = scmp.ne.s32.totalorder %s178, %s179
    %p193 = scmp.eq.s32.totalorder %s19, 1
    %p194 = por %p192, %p193
    %p196 = scmp.ne.s32.totalorder %s179, %s195
    %p197 = scmp.eq.s32.totalorder %s19, 0
    %p198 = por %p196, %p197
    %p199 = scmp.le.s32.totalorder 1, %s13
    %p200 = scmp.lt.s32.totalorder %s13, 3
    %p201 = pnand %p199, %p200
    %p202 = pneg %p201
    // Predicated region
    $region9: #{tpu_custom_call.1} parent=5 // pred_check
      _
    $region10: #{tpu_custom_call.1} parent=5 // pred_check_branch
      %204 = sbr.rel (%p201) target = $region12
    $region11: #{tpu_custom_call.1} parent=5 // pred_region
      %s205 = ssub.s32 %s13, 1
      // Predicated region
      $region13: #{tpu_custom_call.1} parent=11 // pred_check
        %p206 = pneg %p60
      $region14: #{tpu_custom_call.1} parent=11 // pred_check_branch
        %208 = sbr.rel (%p206) target = $region16
      $region15: #{tpu_custom_call.1} parent=11 // pred_region
        _
      $region16: #{tpu_custom_call.1} parent=11 // pred_fallthru
        _
      // Predicated region
      $region17: #{tpu_custom_call.1} parent=11 // pred_check
        %p209 = pneg %p81
      $region18: #{tpu_custom_call.1} parent=11 // pred_check_branch
        %211 = sbr.rel (%p209) target = $region20
      $region19: #{tpu_custom_call.1} parent=11 // pred_region
        _
      $region20: #{tpu_custom_call.1} parent=11 // pred_fallthru
        _
      // Predicated region
      $region21: #{tpu_custom_call.1} parent=11 // pred_check
        %p212 = pneg %p102
      $region22: #{tpu_custom_call.1} parent=11 // pred_check_branch
        %214 = sbr.rel (%p212) target = $region24
      $region23: #{tpu_custom_call.1} parent=11 // pred_region
        _
      $region24: #{tpu_custom_call.1} parent=11 // pred_fallthru
        _
      // Predicated region
      $region25: #{tpu_custom_call.1} parent=11 // pred_check
        %p215 = pneg %p123
      $region26: #{tpu_custom_call.1} parent=11 // pred_check_branch
        %217 = sbr.rel (%p215) target = $region28
      $region27: #{tpu_custom_call.1} parent=11 // pred_region
        _
      $region28: #{tpu_custom_call.1} parent=11 // pred_fallthru
        _
      // Predicated region
      $region29: #{tpu_custom_call.1} parent=11 // pred_check
        %p218 = pneg %p144
      $region30: #{tpu_custom_call.1} parent=11 // pred_check_branch
        %220 = sbr.rel (%p218) target = $region32
      $region31: #{tpu_custom_call.1} parent=11 // pred_region
        _
      $region32: #{tpu_custom_call.1} parent=11 // pred_fallthru
        _
      // Predicated region
      $region33: #{tpu_custom_call.1} parent=11 // pred_check
        %p221 = pneg %p165
      $region34: #{tpu_custom_call.1} parent=11 // pred_check_branch
        %223 = sbr.rel (%p221) target = $region36
      $region35: #{tpu_custom_call.1} parent=11 // pred_region
        _
      $region36: #{tpu_custom_call.1} parent=11 // pred_fallthru
        _
    $region12: #{tpu_custom_call.1} parent=5 // pred_fallthru
      _
    %p224 = scmp.lt.s32.totalorder %s13, 2
    // Predicated region
    $region37: #{tpu_custom_call.1} parent=5 // pred_check
      %p225 = pneg %p224
    $region38: #{tpu_custom_call.1} parent=5 // pred_check_branch
      %227 = sbr.rel (%p225) target = $region40
    $region39: #{tpu_custom_call.1} parent=5 // pred_region
      // Predicated region
      $region41: #{tpu_custom_call.1} parent=39 // pred_check
        %p228 = pneg %p33
      $region42: #{tpu_custom_call.1} parent=39 // pred_check_branch
        %230 = sbr.rel (%p228) target = $region44
      $region43: #{tpu_custom_call.1} parent=39 // pred_region
        %s231 = smul.u32 8, %s13
        %p232 = scmp.lt.s32.totalorder %s231, 15
        %s233 = scalar_select %p232, %s231, 15
        %s234 = smul.addr %s233, 8
        %s235 = scalar_lea.vmem %s0, %s234
        %s236 = smul.u32 8, %s13
      $region44: #{tpu_custom_call.1} parent=39 // pred_fallthru
        _
    $region40: #{tpu_custom_call.1} parent=5 // pred_fallthru
      _
    %p237 = scmp.le.s32.totalorder 1, %s13
    %p238 = scmp.lt.s32.totalorder %s13, 3
    %p239 = pnand %p237, %p238
    %p240 = pneg %p239
    // Predicated region
    $region45: #{tpu_custom_call.1} parent=5 // pred_check
      _
    $region46: #{tpu_custom_call.1} parent=5 // pred_check_branch
      %242 = sbr.rel (%p239) target = $region48
    $region47: #{tpu_custom_call.1} parent=5 // pred_region
      %s243 = ssub.s32 %s13, 1
      %s244 = smul.u32 8, %s18
      %p245 = scmp.lt.s32.totalorder %s244, 15
      %s246 = scalar_select %p245, %s244, 15
      %s247 = smul.addr %s246, 8
      %s248 = scalar_lea.vmem %s0, %s247
      %p249 = pneg %p39
      %p250 = pneg %p36
      %p251 = pneg %p60
      %p252 = pneg %p57
      %p253 = pneg %p81
      %p254 = pneg %p78
      %p255 = pneg %p102
      %p256 = pneg %p99
      %p257 = pneg %p123
      %p258 = pneg %p120
      %p259 = pneg %p144
      %p260 = pneg %p141
      %p261 = pneg %p165
      %p262 = pneg %p162
      %p263 = pneg %p191
      %p264 = pneg %p188
      %s265 = smul.u32 8, %s18
      %p266 = scmp.lt.s32.totalorder %s265, 15
      %s267 = scalar_select %p266, %s265, 15
      %s268 = smul.addr %s267, 8
      %s269 = scalar_lea.vmem %s7, %s268
      %s270 = smul.u32 8, %s18
      %p271 = scmp.lt.s32.totalorder %s270, 15
      %s272 = scalar_select %p271, %s270, 15
      %s273 = smul.addr %s272, 8
      %s274 = scalar_lea.vmem %s0, %s273
      %s275 = smul.u32 8, %s18
      %s276 = smul.u32 8, %s18
      %p277 = scmp.lt.s32.totalorder %s276, 15
      %s278 = scalar_select %p277, %s276, 15
      %s279 = smul.addr %s278, 8
      %s280 = scalar_lea.vmem %s7, %s279
      %s281 = smul.u32 8, %s18
      %v283 = vld [vmem:[%s274] sm:$0xff]
      %v284 = vld [vmem:[%s274 + $0x8] sm:$0xff]
      %v285 = vld [vmem:[%s274 + $0x10] sm:$0xff]
      %v286 = vld [vmem:[%s274 + $0x18] sm:$0xff]
      %v287 = vld [vmem:[%s274 + $0x20] sm:$0xff]
      %v288 = vld [vmem:[%s274 + $0x28] sm:$0xff]
      %v289 = vld [vmem:[%s274 + $0x30] sm:$0xff]
      %v290 = vld [vmem:[%s274 + $0x38] sm:$0xff]
      %v291 = vpack.c.bf16 %v284, %v283
      %v292 = vpack.c.bf16 %v286, %v285
      %v293 = vpack.c.bf16 %v288, %v287
      %v294 = vpack.c.bf16 %v290, %v289
      %v295 = vld [vmem:[%s1] sm:$0xff]
      %v296 = vld [vmem:[%s1 + $0x8] sm:$0xff]
      %v297 = vld [vmem:[%s1 + $0x10] sm:$0xff]
      %v298 = vld [vmem:[%s1 + $0x18] sm:$0xff]
      %v299 = vld [vmem:[%s1 + $0x20] sm:$0xff]
      %v300 = vld [vmem:[%s1 + $0x28] sm:$0xff]
      %v301 = vld [vmem:[%s1 + $0x30] sm:$0xff]
      %v302 = vld [vmem:[%s1 + $0x38] sm:$0xff]
      %v303 = vld [vmem:[%s2] sm:$0xf]
      %v304 = vld [vmem:[%s2 + $0x4] sm:$0xf]
      %v305 = vld [vmem:[%s2 + $0x8] sm:$0xf]
      %v306 = vld [vmem:[%s2 + $0xc] sm:$0xf]
      %v307 = vld [vmem:[%s3] sm:$0x1]
      %v309 = vlaneseq
      %v310 = vshrl.u32 %v309, 7
      %v311 = vsub.s32 0, %v310
      %v312 = vrot.slane %v307, %v311
      %v318 = vunpack.c.l.b16 %v303
      %v319 = vunpack.c.l.b16 %v304
      %v320 = vunpack.c.l.b16 %v305
      %v321 = vunpack.c.l.b16 %v306
      %v322 = vpack.c.b16 %v319, %v318
      %v323 = vpack.c.b16 %v321, %v320
      %vm326 = vcmask 261120
      %v328 = vsel %vm326, %v291, 0
      %v331 = vsel %vm326, %v292, 0
      %v334 = vsel %vm326, %v293, 0
      %v337 = vsel %vm326, %v294, 0
      %339 = vmatprep.subr.bf16.mxu0 0
      %340 = vmatpush1.bf16.msra.mxu0 0
      %341 = vmatprep.subr.bf16.mxu0 0
      %342 = vmatpush1.bf16.msra.mxu0 0
      %343 = vmatprep.subr.bf16.mxu0 0
      %344 = vmatpush1.bf16.msra.mxu0 0
      %345 = vmatprep.subr.bf16.mxu0 0
      %346 = vmatpush1.bf16.msra.mxu0 0
      %347 = vmatprep.subr.bf16.mxu0 0
      %348 = vmatpush1.bf16.msra.mxu0 0
      %349 = vmatprep.subr.bf16.mxu0 0
      %350 = vmatpush1.bf16.msra.mxu0 0
      %351 = vmatprep.subr.bf16.mxu0 0
      %352 = vmatpush1.bf16.msra.mxu0 %v323
      %353 = vmatprep.subr.bf16.mxu0 0
      %354 = vmatpush1.bf16.msra.mxu0 %v322
      %355 = vmatprep.subr.bf16.mxu0 0
      %356 = vmatpush2.bf16.msra.mxu0 0
      %357 = vmatprep.subr.bf16.mxu0 0
      %358 = vmatpush2.bf16.msra.mxu0 0
      %359 = vmatprep.subr.bf16.mxu0 0
      %360 = vmatpush2.bf16.msra.mxu0 0
      %361 = vmatprep.subr.bf16.mxu0 0
      %362 = vmatpush2.bf16.msra.mxu0 0
      %363 = vmatprep.subr.bf16.mxu0 0
      %364 = vmatpush2.bf16.msra.mxu0 0
      %365 = vmatprep.subr.bf16.mxu0 0
      %366 = vmatpush2.bf16.msra.mxu0 0
      %367 = vmatprep.subr.bf16.mxu0 0
      %368 = vmatpush2.bf16.msra.mxu0 0
      %369 = vmatprep.subr.bf16.mxu0 0
      %370 = vmatpush2.bf16.msra.mxu0 0
      %371 = vmatprep.mubr.bf16.mxu0 0
      %372 = vmatmul.mubr.bf16.gmra.mxu0 %v328
      %v373 = vpop.f32.mrf.mxu0
      %v374 = vadd.f32 %v312, %v373
      %v375 = vpop.f32.mrf.mxu0
      %v376 = vpop.f32.mrf.mxu0
      %v377 = vadd.f32 %v312, %v376
      %v378 = vpop.f32.mrf.mxu0
      %379 = vmatprep.mubr.bf16.mxu0 0
      %380 = vmatmul.mubr.bf16.gmra.mxu0 %v331
      %v381 = vpop.f32.mrf.mxu0
      %v382 = vadd.f32 %v312, %v381
      %v383 = vpop.f32.mrf.mxu0
      %v384 = vpop.f32.mrf.mxu0
      %v385 = vadd.f32 %v312, %v384
      %v386 = vpop.f32.mrf.mxu0
      %387 = vmatprep.mubr.bf16.mxu0 0
      %388 = vmatmul.mubr.bf16.gmra.mxu0 %v334
      %v389 = vpop.f32.mrf.mxu0
      %v390 = vadd.f32 %v312, %v389
      %v391 = vpop.f32.mrf.mxu0
      %v392 = vpop.f32.mrf.mxu0
      %v393 = vadd.f32 %v312, %v392
      %v394 = vpop.f32.mrf.mxu0
      %395 = vmatprep.mubr.bf16.mxu0 0
      %396 = vmatmul.mubr.bf16.gmra.mxu0 %v337
      %v397 = vpop.f32.mrf.mxu0
      %v398 = vadd.f32 %v312, %v397
      %v399 = vpop.f32.mrf.mxu0
      %v400 = vpop.f32.mrf.mxu0
      %v401 = vadd.f32 %v312, %v400
      %v402 = vpop.f32.mrf.mxu0
      %403 = vdwg.mxu0
      %v404 = vpack.c.bf16 %v377, %v374
      %v405 = vpack.c.bf16 %v385, %v382
      %v406 = vpack.c.bf16 %v393, %v390
      %v407 = vpack.c.bf16 %v401, %v398
      %v408 = vld [vmem:[%s4] sm:$0xff]
      %v409 = vld [vmem:[%s4 + $0x8] sm:$0xff]
      %411 = vrot.lane.b32.xlu0 %v404, 96
      %v412 = vpop.permute.xlu0 %411
      %vm413 = vcmask 64512
      %v415 = vsel %vm413, %v404, 0
      %v418 = vsel %vm413, %v412, 0
      %420 = vmatprep.subr.bf16.mxu0 0
      %421 = vmatpush1.bf16.xpose.msra.mxu0 0
      %422 = vmatprep.subr.bf16.mxu0 0
      %423 = vmatpush1.bf16.xpose.msra.mxu0 0
      %424 = vmatprep.subr.bf16.mxu0 0
      %425 = vmatpush1.bf16.xpose.msra.mxu0 0
      %426 = vmatprep.subr.bf16.mxu0 0
      %427 = vmatpush1.bf16.xpose.msra.mxu0 0
      %428 = vmatprep.subr.bf16.mxu0 0
      %429 = vmatpush1.bf16.xpose.msra.mxu0 0
      %430 = vmatprep.subr.bf16.mxu0 0
      %431 = vmatpush1.bf16.xpose.msra.mxu0 0
      %432 = vmatprep.subr.bf16.mxu0 0
      %433 = vmatpush1.bf16.xpose.msra.mxu0 0
      %434 = vmatprep.subr.bf16.mxu0 0
      %435 = vmatpush1.bf16.xpose.msra.mxu0 %v418
      %436 = vmatprep.subr.bf16.mxu0 0
      %437 = vmatpush2.bf16.xpose.msra.mxu0 0
      %438 = vmatprep.subr.bf16.mxu0 0
      %439 = vmatpush2.bf16.xpose.msra.mxu0 0
      %440 = vmatprep.subr.bf16.mxu0 0
      %441 = vmatpush2.bf16.xpose.msra.mxu0 0
      %442 = vmatprep.subr.bf16.mxu0 0
      %443 = vmatpush2.bf16.xpose.msra.mxu0 0
      %444 = vmatprep.subr.bf16.mxu0 0
      %445 = vmatpush2.bf16.xpose.msra.mxu0 0
      %446 = vmatprep.subr.bf16.mxu0 0
      %447 = vmatpush2.bf16.xpose.msra.mxu0 0
      %448 = vmatprep.subr.bf16.mxu0 0
      %449 = vmatpush2.bf16.xpose.msra.mxu0 0
      %450 = vmatprep.subr.bf16.mxu0 0
      %451 = vmatpush2.bf16.xpose.msra.mxu0 0
      %452 = vmatprep.mubr.bf16.mxu0 0
      %453 = vmatmul.mubr.bf16.gmra.mxu0 %v415
      %v454 = vpop.f32.mrf.mxu0
      %v455 = vadd.f32 %v408, %v454
      %v456 = vpop.f32.mrf.mxu0
      %v457 = vpop.f32.mrf.mxu0
      %v458 = vadd.f32 %v409, %v457
      %v459 = vpop.f32.mrf.mxu0
      %460 = vdwg.mxu0
      %462 = vrot.lane.b32.xlu0 %v405, 96
      %v463 = vpop.permute.xlu0 %462
      %v465 = vsel %vm413, %v405, 0
      %v468 = vsel %vm413, %v463, 0
      %470 = vmatprep.subr.bf16.mxu0 0
      %471 = vmatpush1.bf16.xpose.msra.mxu0 0
      %472 = vmatprep.subr.bf16.mxu0 0
      %473 = vmatpush1.bf16.xpose.msra.mxu0 0
      %474 = vmatprep.subr.bf16.mxu0 0
      %475 = vmatpush1.bf16.xpose.msra.mxu0 0
      %476 = vmatprep.subr.bf16.mxu0 0
      %477 = vmatpush1.bf16.xpose.msra.mxu0 0
      %478 = vmatprep.subr.bf16.mxu0 0
      %479 = vmatpush1.bf16.xpose.msra.mxu0 0
      %480 = vmatprep.subr.bf16.mxu0 0
      %481 = vmatpush1.bf16.xpose.msra.mxu0 0
      %482 = vmatprep.subr.bf16.mxu0 0
      %483 = vmatpush1.bf16.xpose.msra.mxu0 0
      %484 = vmatprep.subr.bf16.mxu0 0
      %485 = vmatpush1.bf16.xpose.msra.mxu0 %v468
      %486 = vmatprep.subr.bf16.mxu0 0
      %487 = vmatpush2.bf16.xpose.msra.mxu0 0
      %488 = vmatprep.subr.bf16.mxu0 0
      %489 = vmatpush2.bf16.xpose.msra.mxu0 0
      %490 = vmatprep.subr.bf16.mxu0 0
      %491 = vmatpush2.bf16.xpose.msra.mxu0 0
      %492 = vmatprep.subr.bf16.mxu0 0
      %493 = vmatpush2.bf16.xpose.msra.mxu0 0
      %494 = vmatprep.subr.bf16.mxu0 0
      %495 = vmatpush2.bf16.xpose.msra.mxu0 0
      %496 = vmatprep.subr.bf16.mxu0 0
      %497 = vmatpush2.bf16.xpose.msra.mxu0 0
      %498 = vmatprep.subr.bf16.mxu0 0
      %499 = vmatpush2.bf16.xpose.msra.mxu0 0
      %500 = vmatprep.subr.bf16.mxu0 0
      %501 = vmatpush2.bf16.xpose.msra.mxu0 0
      %502 = vmatprep.mubr.bf16.mxu0 0
      %503 = vmatmul.mubr.bf16.gmra.mxu0 %v465
      %v504 = vpop.f32.mrf.mxu0
      %v505 = vadd.f32 %v408, %v504
      %v506 = vpop.f32.mrf.mxu0
      %v507 = vpop.f32.mrf.mxu0
      %v508 = vadd.f32 %v409, %v507
      %v509 = vpop.f32.mrf.mxu0
      %510 = vdwg.mxu0
      %512 = vrot.lane.b32.xlu0 %v406, 96
      %v513 = vpop.permute.xlu0 %512
      %v515 = vsel %vm413, %v406, 0
      %v518 = vsel %vm413, %v513, 0
      %520 = vmatprep.subr.bf16.mxu0 0
      %521 = vmatpush1.bf16.xpose.msra.mxu0 0
      %522 = vmatprep.subr.bf16.mxu0 0
      %523 = vmatpush1.bf16.xpose.msra.mxu0 0
      %524 = vmatprep.subr.bf16.mxu0 0
      %525 = vmatpush1.bf16.xpose.msra.mxu0 0
      %526 = vmatprep.subr.bf16.mxu0 0
      %527 = vmatpush1.bf16.xpose.msra.mxu0 0
      %528 = vmatprep.subr.bf16.mxu0 0
      %529 = vmatpush1.bf16.xpose.msra.mxu0 0
      %530 = vmatprep.subr.bf16.mxu0 0
      %531 = vmatpush1.bf16.xpose.msra.mxu0 0
      %532 = vmatprep.subr.bf16.mxu0 0
      %533 = vmatpush1.bf16.xpose.msra.mxu0 0
      %534 = vmatprep.subr.bf16.mxu0 0
      %535 = vmatpush1.bf16.xpose.msra.mxu0 %v518
      %536 = vmatprep.subr.bf16.mxu0 0
      %537 = vmatpush2.bf16.xpose.msra.mxu0 0
      %538 = vmatprep.subr.bf16.mxu0 0
      %539 = vmatpush2.bf16.xpose.msra.mxu0 0
      %540 = vmatprep.subr.bf16.mxu0 0
      %541 = vmatpush2.bf16.xpose.msra.mxu0 0
      %542 = vmatprep.subr.bf16.mxu0 0
      %543 = vmatpush2.bf16.xpose.msra.mxu0 0
      %544 = vmatprep.subr.bf16.mxu0 0
      %545 = vmatpush2.bf16.xpose.msra.mxu0 0
      %546 = vmatprep.subr.bf16.mxu0 0
      %547 = vmatpush2.bf16.xpose.msra.mxu0 0
      %548 = vmatprep.subr.bf16.mxu0 0
      %549 = vmatpush2.bf16.xpose.msra.mxu0 0
      %550 = vmatprep.subr.bf16.mxu0 0
      %551 = vmatpush2.bf16.xpose.msra.mxu0 0
      %552 = vmatprep.mubr.bf16.mxu0 0
      %553 = vmatmul.mubr.bf16.gmra.mxu0 %v515
      %v554 = vpop.f32.mrf.mxu0
      %v555 = vadd.f32 %v408, %v554
      %v556 = vpop.f32.mrf.mxu0
      %v557 = vpop.f32.mrf.mxu0
      %v558 = vadd.f32 %v409, %v557
      %v559 = vpop.f32.mrf.mxu0
      %560 = vdwg.mxu0
      %562 = vrot.lane.b32.xlu0 %v407, 96
      %v563 = vpop.permute.xlu0 %562
      %v565 = vsel %vm413, %v407, 0
      %v568 = vsel %vm413, %v563, 0
      %570 = vmatprep.subr.bf16.mxu0 0
      %571 = vmatpush1.bf16.xpose.msra.mxu0 0
      %572 = vmatprep.subr.bf16.mxu0 0
      %573 = vmatpush1.bf16.xpose.msra.mxu0 0
      %574 = vmatprep.subr.bf16.mxu0 0
      %575 = vmatpush1.bf16.xpose.msra.mxu0 0
      %576 = vmatprep.subr.bf16.mxu0 0
      %577 = vmatpush1.bf16.xpose.msra.mxu0 0
      %578 = vmatprep.subr.bf16.mxu0 0
      %579 = vmatpush1.bf16.xpose.msra.mxu0 0
      %580 = vmatprep.subr.bf16.mxu0 0
      %581 = vmatpush1.bf16.xpose.msra.mxu0 0
      %582 = vmatprep.subr.bf16.mxu0 0
      %583 = vmatpush1.bf16.xpose.msra.mxu0 0
      %584 = vmatprep.subr.bf16.mxu0 0
      %585 = vmatpush1.bf16.xpose.msra.mxu0 %v568
      %586 = vmatprep.subr.bf16.mxu0 0
      %587 = vmatpush2.bf16.xpose.msra.mxu0 0
      %588 = vmatprep.subr.bf16.mxu0 0
      %589 = vmatpush2.bf16.xpose.msra.mxu0 0
      %590 = vmatprep.subr.bf16.mxu0 0
      %591 = vmatpush2.bf16.xpose.msra.mxu0 0
      %592 = vmatprep.subr.bf16.mxu0 0
      %593 = vmatpush2.bf16.xpose.msra.mxu0 0
      %594 = vmatprep.subr.bf16.mxu0 0
      %595 = vmatpush2.bf16.xpose.msra.mxu0 0
      %596 = vmatprep.subr.bf16.mxu0 0
      %597 = vmatpush2.bf16.xpose.msra.mxu0 0
      %598 = vmatprep.subr.bf16.mxu0 0
      %599 = vmatpush2.bf16.xpose.msra.mxu0 0
      %600 = vmatprep.subr.bf16.mxu0 0
      %601 = vmatpush2.bf16.xpose.msra.mxu0 0
      %602 = vmatprep.mubr.bf16.mxu0 0
      %603 = vmatmul.mubr.bf16.gmra.mxu0 %v565
      %v604 = vpop.f32.mrf.mxu0
      %v605 = vadd.f32 %v408, %v604
      %v606 = vpop.f32.mrf.mxu0
      %v607 = vpop.f32.mrf.mxu0
      %v608 = vadd.f32 %v409, %v607
      %v609 = vpop.f32.mrf.mxu0
      %610 = vdwg.mxu0
      %v611 = vadd.f32 %v455, %v295
      %v612 = vadd.f32 %v458, %v296
      %v613 = vadd.f32 %v505, %v297
      %v614 = vadd.f32 %v508, %v298
      %v615 = vadd.f32 %v555, %v299
      %v616 = vadd.f32 %v558, %v300
      %v617 = vadd.f32 %v605, %v301
      %v618 = vadd.f32 %v608, %v302
      %vm619 = vcmask 130048
      %v620 = vsel %vm619, %v611, -inf
      %621 = vmax.xlane.f32.xlu0 %v620
      %v622 = vpop.xlane.xlu0 %621
      %v623 = vsel %vm619, %v612, -inf
      %624 = vmax.xlane.f32.xlu0 %v623
      %v625 = vpop.xlane.xlu0 %624
      %v626 = vsel %vm619, %v613, -inf
      %627 = vmax.xlane.f32.xlu0 %v626
      %v628 = vpop.xlane.xlu0 %627
      %v629 = vsel %vm619, %v614, -inf
      %630 = vmax.xlane.f32.xlu0 %v629
      %v631 = vpop.xlane.xlu0 %630
      %v632 = vsel %vm619, %v615, -inf
      %633 = vmax.xlane.f32.xlu0 %v632
      %v634 = vpop.xlane.xlu0 %633
      %v635 = vsel %vm619, %v616, -inf
      %636 = vmax.xlane.f32.xlu0 %v635
      %v637 = vpop.xlane.xlu0 %636
      %v638 = vsel %vm619, %v617, -inf
      %639 = vmax.xlane.f32.xlu0 %v638
      %v640 = vpop.xlane.xlu0 %639
      %v641 = vsel %vm619, %v618, -inf
      %642 = vmax.xlane.f32.xlu0 %v641
      %v643 = vpop.xlane.xlu0 %642
      %v644 = vsub.f32 %v611, %v622
      %v645 = vsub.f32 %v612, %v625
      %v646 = vsub.f32 %v613, %v628
      %v647 = vsub.f32 %v614, %v631
      %v648 = vsub.f32 %v615, %v634
      %v649 = vsub.f32 %v616, %v637
      %v650 = vsub.f32 %v617, %v640
      %v651 = vsub.f32 %v618, %v643
      %v652 = vmul.f32 %v644, 1.442695
      %v653 = vpow.pop %v652
      %v654 = vmul.f32 %v645, 1.442695
      %v655 = vpow.pop %v654
      %v656 = vmul.f32 %v646, 1.442695
      %v657 = vpow.pop %v656
      %v658 = vmul.f32 %v647, 1.442695
      %v659 = vpow.pop %v658
      %v660 = vmul.f32 %v648, 1.442695
      %v661 = vpow.pop %v660
      %v662 = vmul.f32 %v649, 1.442695
      %v663 = vpow.pop %v662
      %v664 = vmul.f32 %v650, 1.442695
      %v665 = vpow.pop %v664
      %v666 = vmul.f32 %v651, 1.442695
      %v667 = vpow.pop %v666
      %v668 = vsel %vm619, %v653, 0.0
      %669 = vadd.xlane.f32.xlu0 %v668
      %v670 = vpop.xlane.xlu0 %669
      %v671 = vsel %vm619, %v655, 0.0
      %672 = vadd.xlane.f32.xlu0 %v671
      %v673 = vpop.xlane.xlu0 %672
      %v674 = vsel %vm619, %v657, 0.0
      %675 = vadd.xlane.f32.xlu0 %v674
      %v676 = vpop.xlane.xlu0 %675
      %v677 = vsel %vm619, %v659, 0.0
      %678 = vadd.xlane.f32.xlu0 %v677
      %v679 = vpop.xlane.xlu0 %678
      %v680 = vsel %vm619, %v661, 0.0
      %681 = vadd.xlane.f32.xlu0 %v680
      %v682 = vpop.xlane.xlu0 %681
      %v683 = vsel %vm619, %v663, 0.0
      %684 = vadd.xlane.f32.xlu0 %v683
      %v685 = vpop.xlane.xlu0 %684
      %v686 = vsel %vm619, %v665, 0.0
      %687 = vadd.xlane.f32.xlu0 %v686
      %v688 = vpop.xlane.xlu0 %687
      %v689 = vsel %vm619, %v667, 0.0
      %690 = vadd.xlane.f32.xlu0 %v689
      %v691 = vpop.xlane.xlu0 %690
      %v692 = vrcp.pop %v670
      %v693 = vrcp.pop %v673
      %v694 = vrcp.pop %v676
      %v695 = vrcp.pop %v679
      %v696 = vrcp.pop %v682
      %v697 = vrcp.pop %v685
      %v698 = vrcp.pop %v688
      %v699 = vrcp.pop %v691
      %v700 = vmul.f32 %v653, %v692
      %v701 = vmul.f32 %v655, %v693
      %v702 = vmul.f32 %v657, %v694
      %v703 = vmul.f32 %v659, %v695
      %v704 = vmul.f32 %v661, %v696
      %v705 = vmul.f32 %v663, %v697
      %v706 = vmul.f32 %v665, %v698
      %v707 = vmul.f32 %v667, %v699
      %v708 = vpack.c.bf16 %v701, %v700
      %v709 = vpack.c.bf16 %v703, %v702
      %v710 = vpack.c.bf16 %v705, %v704
      %v711 = vpack.c.bf16 %v707, %v706
      %712 = vrot.lane.b32.xlu0 %v404, 64
      %v713 = vpop.permute.xlu0 %712
      %v716 = vsel %vm619, %v708, 0
      %718 = vmatprep.subr.bf16.mxu0 0
      %719 = vmatpush1.bf16.msra.mxu0 0
      %720 = vmatprep.subr.bf16.mxu0 0
      %721 = vmatpush1.bf16.msra.mxu0 0
      %722 = vmatprep.subr.bf16.mxu0 0
      %723 = vmatpush1.bf16.msra.mxu0 0
      %724 = vmatprep.subr.bf16.mxu0 0
      %725 = vmatpush1.bf16.msra.mxu0 0
      %726 = vmatprep.subr.bf16.mxu0 0
      %727 = vmatpush1.bf16.msra.mxu0 0
      %728 = vmatprep.subr.bf16.mxu0 0
      %729 = vmatpush1.bf16.msra.mxu0 0
      %730 = vmatprep.subr.bf16.mxu0 0
      %731 = vmatpush1.bf16.msra.mxu0 0
      %732 = vmatprep.subr.bf16.mxu0 0
      %733 = vmatpush1.bf16.msra.mxu0 %v713
      %734 = vmatprep.subr.bf16.mxu0 0
      %735 = vmatpush2.bf16.msra.mxu0 0
      %736 = vmatprep.subr.bf16.mxu0 0
      %737 = vmatpush2.bf16.msra.mxu0 0
      %738 = vmatprep.subr.bf16.mxu0 0
      %739 = vmatpush2.bf16.msra.mxu0 0
      %740 = vmatprep.subr.bf16.mxu0 0
      %741 = vmatpush2.bf16.msra.mxu0 0
      %742 = vmatprep.subr.bf16.mxu0 0
      %743 = vmatpush2.bf16.msra.mxu0 0
      %744 = vmatprep.subr.bf16.mxu0 0
      %745 = vmatpush2.bf16.msra.mxu0 0
      %746 = vmatprep.subr.bf16.mxu0 0
      %747 = vmatpush2.bf16.msra.mxu0 0
      %748 = vmatprep.subr.bf16.mxu0 0
      %749 = vmatpush2.bf16.msra.mxu0 0
      %750 = vmatprep.mubr.bf16.mxu0 0
      %751 = vmatmul.mubr.bf16.gmra.mxu0 %v716
      %v752 = vpop.f32.mrf.mxu0
      %v753 = vadd.f32 0.0, %v752
      %v754 = vpop.f32.mrf.mxu0
      %v755 = vpop.f32.mrf.mxu0
      %v756 = vadd.f32 0.0, %v755
      %v757 = vpop.f32.mrf.mxu0
      %758 = vdwg.mxu0
      %759 = vrot.lane.b32.xlu0 %v405, 64
      %v760 = vpop.permute.xlu0 %759
      %v763 = vsel %vm619, %v709, 0
      %765 = vmatprep.subr.bf16.mxu0 0
      %766 = vmatpush1.bf16.msra.mxu0 0
      %767 = vmatprep.subr.bf16.mxu0 0
      %768 = vmatpush1.bf16.msra.mxu0 0
      %769 = vmatprep.subr.bf16.mxu0 0
      %770 = vmatpush1.bf16.msra.mxu0 0
      %771 = vmatprep.subr.bf16.mxu0 0
      %772 = vmatpush1.bf16.msra.mxu0 0
      %773 = vmatprep.subr.bf16.mxu0 0
      %774 = vmatpush1.bf16.msra.mxu0 0
      %775 = vmatprep.subr.bf16.mxu0 0
      %776 = vmatpush1.bf16.msra.mxu0 0
      %777 = vmatprep.subr.bf16.mxu0 0
      %778 = vmatpush1.bf16.msra.mxu0 0
      %779 = vmatprep.subr.bf16.mxu0 0
      %780 = vmatpush1.bf16.msra.mxu0 %v760
      %781 = vmatprep.subr.bf16.mxu0 0
      %782 = vmatpush2.bf16.msra.mxu0 0
      %783 = vmatprep.subr.bf16.mxu0 0
      %784 = vmatpush2.bf16.msra.mxu0 0
      %785 = vmatprep.subr.bf16.mxu0 0
      %786 = vmatpush2.bf16.msra.mxu0 0
      %787 = vmatprep.subr.bf16.mxu0 0
      %788 = vmatpush2.bf16.msra.mxu0 0
      %789 = vmatprep.subr.bf16.mxu0 0
      %790 = vmatpush2.bf16.msra.mxu0 0
      %791 = vmatprep.subr.bf16.mxu0 0
      %792 = vmatpush2.bf16.msra.mxu0 0
      %793 = vmatprep.subr.bf16.mxu0 0
      %794 = vmatpush2.bf16.msra.mxu0 0
      %795 = vmatprep.subr.bf16.mxu0 0
      %796 = vmatpush2.bf16.msra.mxu0 0
      %797 = vmatprep.mubr.bf16.mxu0 0
      %798 = vmatmul.mubr.bf16.gmra.mxu0 %v763
      %v799 = vpop.f32.mrf.mxu0
      %v800 = vadd.f32 0.0, %v799
      %v801 = vpop.f32.mrf.mxu0
      %v802 = vpop.f32.mrf.mxu0
      %v803 = vadd.f32 0.0, %v802
      %v804 = vpop.f32.mrf.mxu0
      %805 = vdwg.mxu0
      %806 = vrot.lane.b32.xlu0 %v406, 64
      %v807 = vpop.permute.xlu0 %806
      %v810 = vsel %vm619, %v710, 0
      %812 = vmatprep.subr.bf16.mxu0 0
      %813 = vmatpush1.bf16.msra.mxu0 0
      %814 = vmatprep.subr.bf16.mxu0 0
      %815 = vmatpush1.bf16.msra.mxu0 0
      %816 = vmatprep.subr.bf16.mxu0 0
      %817 = vmatpush1.bf16.msra.mxu0 0
      %818 = vmatprep.subr.bf16.mxu0 0
      %819 = vmatpush1.bf16.msra.mxu0 0
      %820 = vmatprep.subr.bf16.mxu0 0
      %821 = vmatpush1.bf16.msra.mxu0 0
      %822 = vmatprep.subr.bf16.mxu0 0
      %823 = vmatpush1.bf16.msra.mxu0 0
      %824 = vmatprep.subr.bf16.mxu0 0
      %825 = vmatpush1.bf16.msra.mxu0 0
      %826 = vmatprep.subr.bf16.mxu0 0
      %827 = vmatpush1.bf16.msra.mxu0 %v807
      %828 = vmatprep.subr.bf16.mxu0 0
      %829 = vmatpush2.bf16.msra.mxu0 0
      %830 = vmatprep.subr.bf16.mxu0 0
      %831 = vmatpush2.bf16.msra.mxu0 0
      %832 = vmatprep.subr.bf16.mxu0 0
      %833 = vmatpush2.bf16.msra.mxu0 0
      %834 = vmatprep.subr.bf16.mxu0 0
      %835 = vmatpush2.bf16.msra.mxu0 0
      %836 = vmatprep.subr.bf16.mxu0 0
      %837 = vmatpush2.bf16.msra.mxu0 0
      %838 = vmatprep.subr.bf16.mxu0 0
      %839 = vmatpush2.bf16.msra.mxu0 0
      %840 = vmatprep.subr.bf16.mxu0 0
      %841 = vmatpush2.bf16.msra.mxu0 0
      %842 = vmatprep.subr.bf16.mxu0 0
      %843 = vmatpush2.bf16.msra.mxu0 0
      %844 = vmatprep.mubr.bf16.mxu0 0
      %845 = vmatmul.mubr.bf16.gmra.mxu0 %v810
      %v846 = vpop.f32.mrf.mxu0
      %v847 = vadd.f32 0.0, %v846
      %v848 = vpop.f32.mrf.mxu0
      %v849 = vpop.f32.mrf.mxu0
      %v850 = vadd.f32 0.0, %v849
      %v851 = vpop.f32.mrf.mxu0
      %852 = vdwg.mxu0
      %853 = vrot.lane.b32.xlu0 %v407, 64
      %v854 = vpop.permute.xlu0 %853
      %v857 = vsel %vm619, %v711, 0
      %859 = vmatprep.subr.bf16.mxu0 0
      %860 = vmatpush1.bf16.msra.mxu0 0
      %861 = vmatprep.subr.bf16.mxu0 0
      %862 = vmatpush1.bf16.msra.mxu0 0
      %863 = vmatprep.subr.bf16.mxu0 0
      %864 = vmatpush1.bf16.msra.mxu0 0
      %865 = vmatprep.subr.bf16.mxu0 0
      %866 = vmatpush1.bf16.msra.mxu0 0
      %867 = vmatprep.subr.bf16.mxu0 0
      %868 = vmatpush1.bf16.msra.mxu0 0
      %869 = vmatprep.subr.bf16.mxu0 0
      %870 = vmatpush1.bf16.msra.mxu0 0
      %871 = vmatprep.subr.bf16.mxu0 0
      %872 = vmatpush1.bf16.msra.mxu0 0
      %873 = vmatprep.subr.bf16.mxu0 0
      %874 = vmatpush1.bf16.msra.mxu0 %v854
      %875 = vmatprep.subr.bf16.mxu0 0
      %876 = vmatpush2.bf16.msra.mxu0 0
      %877 = vmatprep.subr.bf16.mxu0 0
      %878 = vmatpush2.bf16.msra.mxu0 0
      %879 = vmatprep.subr.bf16.mxu0 0
      %880 = vmatpush2.bf16.msra.mxu0 0
      %881 = vmatprep.subr.bf16.mxu0 0
      %882 = vmatpush2.bf16.msra.mxu0 0
      %883 = vmatprep.subr.bf16.mxu0 0
      %884 = vmatpush2.bf16.msra.mxu0 0
      %885 = vmatprep.subr.bf16.mxu0 0
      %886 = vmatpush2.bf16.msra.mxu0 0
      %887 = vmatprep.subr.bf16.mxu0 0
      %888 = vmatpush2.bf16.msra.mxu0 0
      %889 = vmatprep.subr.bf16.mxu0 0
      %890 = vmatpush2.bf16.msra.mxu0 0
      %891 = vmatprep.mubr.bf16.mxu0 0
      %892 = vmatmul.mubr.bf16.gmra.mxu0 %v857
      %v893 = vpop.f32.mrf.mxu0
      %v894 = vadd.f32 0.0, %v893
      %v895 = vpop.f32.mrf.mxu0
      %v896 = vpop.f32.mrf.mxu0
      %v897 = vadd.f32 0.0, %v896
      %v898 = vpop.f32.mrf.mxu0
      %899 = vdwg.mxu0
      %v900 = vpack.c.bf16 %v756, %v753
      %v901 = vpack.c.bf16 %v803, %v800
      %v902 = vpack.c.bf16 %v850, %v847
      %v903 = vpack.c.bf16 %v897, %v894
      %s904 = scalar_lea.vmem %s4, 16
      %v905 = vld [vmem:[%s904] sm:$0xff]
      %v906 = vld [vmem:[%s904 + $0x8] sm:$0xff]
      %907 = vrot.lane.b32.xlu0 %v404, 120
      %v908 = vpop.permute.xlu0 %907
      %909 = vrot.lane.b32.xlu0 %v404, 88
      %v910 = vpop.permute.xlu0 %909
      %v912 = vsel %vm413, %v908, 0
      %v915 = vsel %vm413, %v910, 0
      %917 = vmatprep.subr.bf16.mxu0 0
      %918 = vmatpush1.bf16.xpose.msra.mxu0 0
      %919 = vmatprep.subr.bf16.mxu0 0
      %920 = vmatpush1.bf16.xpose.msra.mxu0 0
      %921 = vmatprep.subr.bf16.mxu0 0
      %922 = vmatpush1.bf16.xpose.msra.mxu0 0
      %923 = vmatprep.subr.bf16.mxu0 0
      %924 = vmatpush1.bf16.xpose.msra.mxu0 0
      %925 = vmatprep.subr.bf16.mxu0 0
      %926 = vmatpush1.bf16.xpose.msra.mxu0 0
      %927 = vmatprep.subr.bf16.mxu0 0
      %928 = vmatpush1.bf16.xpose.msra.mxu0 0
      %929 = vmatprep.subr.bf16.mxu0 0
      %930 = vmatpush1.bf16.xpose.msra.mxu0 0
      %931 = vmatprep.subr.bf16.mxu0 0
      %932 = vmatpush1.bf16.xpose.msra.mxu0 %v915
      %933 = vmatprep.subr.bf16.mxu0 0
      %934 = vmatpush2.bf16.xpose.msra.mxu0 0
      %935 = vmatprep.subr.bf16.mxu0 0
      %936 = vmatpush2.bf16.xpose.msra.mxu0 0
      %937 = vmatprep.subr.bf16.mxu0 0
      %938 = vmatpush2.bf16.xpose.msra.mxu0 0
      %939 = vmatprep.subr.bf16.mxu0 0
      %940 = vmatpush2.bf16.xpose.msra.mxu0 0
      %941 = vmatprep.subr.bf16.mxu0 0
      %942 = vmatpush2.bf16.xpose.msra.mxu0 0
      %943 = vmatprep.subr.bf16.mxu0 0
      %944 = vmatpush2.bf16.xpose.msra.mxu0 0
      %945 = vmatprep.subr.bf16.mxu0 0
      %946 = vmatpush2.bf16.xpose.msra.mxu0 0
      %947 = vmatprep.subr.bf16.mxu0 0
      %948 = vmatpush2.bf16.xpose.msra.mxu0 0
      %949 = vmatprep.mubr.bf16.mxu0 0
      %950 = vmatmul.mubr.bf16.gmra.mxu0 %v912
      %v951 = vpop.f32.mrf.mxu0
      %v952 = vadd.f32 %v905, %v951
      %v953 = vpop.f32.mrf.mxu0
      %v954 = vpop.f32.mrf.mxu0
      %v955 = vadd.f32 %v906, %v954
      %v956 = vpop.f32.mrf.mxu0
      %957 = vdwg.mxu0
      %958 = vrot.lane.b32.xlu0 %v405, 120
      %v959 = vpop.permute.xlu0 %958
      %960 = vrot.lane.b32.xlu0 %v405, 88
      %v961 = vpop.permute.xlu0 %960
      %v963 = vsel %vm413, %v959, 0
      %v966 = vsel %vm413, %v961, 0
      %968 = vmatprep.subr.bf16.mxu0 0
      %969 = vmatpush1.bf16.xpose.msra.mxu0 0
      %970 = vmatprep.subr.bf16.mxu0 0
      %971 = vmatpush1.bf16.xpose.msra.mxu0 0
      %972 = vmatprep.subr.bf16.mxu0 0
      %973 = vmatpush1.bf16.xpose.msra.mxu0 0
      %974 = vmatprep.subr.bf16.mxu0 0
      %975 = vmatpush1.bf16.xpose.msra.mxu0 0
      %976 = vmatprep.subr.bf16.mxu0 0
      %977 = vmatpush1.bf16.xpose.msra.mxu0 0
      %978 = vmatprep.subr.bf16.mxu0 0
      %979 = vmatpush1.bf16.xpose.msra.mxu0 0
      %980 = vmatprep.subr.bf16.mxu0 0
      %981 = vmatpush1.bf16.xpose.msra.mxu0 0
      %982 = vmatprep.subr.bf16.mxu0 0
      %983 = vmatpush1.bf16.xpose.msra.mxu0 %v966
      %984 = vmatprep.subr.bf16.mxu0 0
      %985 = vmatpush2.bf16.xpose.msra.mxu0 0
      %986 = vmatprep.subr.bf16.mxu0 0
      %987 = vmatpush2.bf16.xpose.msra.mxu0 0
      %988 = vmatprep.subr.bf16.mxu0 0
      %989 = vmatpush2.bf16.xpose.msra.mxu0 0
      %990 = vmatprep.subr.bf16.mxu0 0
      %991 = vmatpush2.bf16.xpose.msra.mxu0 0
      %992 = vmatprep.subr.bf16.mxu0 0
      %993 = vmatpush2.bf16.xpose.msra.mxu0 0
      %994 = vmatprep.subr.bf16.mxu0 0
      %995 = vmatpush2.bf16.xpose.msra.mxu0 0
      %996 = vmatprep.subr.bf16.mxu0 0
      %997 = vmatpush2.bf16.xpose.msra.mxu0 0
      %998 = vmatprep.subr.bf16.mxu0 0
      %999 = vmatpush2.bf16.xpose.msra.mxu0 0
      %1000 = vmatprep.mubr.bf16.mxu0 0
      %1001 = vmatmul.mubr.bf16.gmra.mxu0 %v963
      %v1002 = vpop.f32.mrf.mxu0
      %v1003 = vadd.f32 %v905, %v1002
      %v1004 = vpop.f32.mrf.mxu0
      %v1005 = vpop.f32.mrf.mxu0
      %v1006 = vadd.f32 %v906, %v1005
      %v1007 = vpop.f32.mrf.mxu0
      %1008 = vdwg.mxu0
      %1009 = vrot.lane.b32.xlu0 %v406, 120
      %v1010 = vpop.permute.xlu0 %1009
      %1011 = vrot.lane.b32.xlu0 %v406, 88
      %v1012 = vpop.permute.xlu0 %1011
      %v1014 = vsel %vm413, %v1010, 0
      %v1017 = vsel %vm413, %v1012, 0
      %1019 = vmatprep.subr.bf16.mxu0 0
      %1020 = vmatpush1.bf16.xpose.msra.mxu0 0
      %1021 = vmatprep.subr.bf16.mxu0 0
      %1022 = vmatpush1.bf16.xpose.msra.mxu0 0
      %1023 = vmatprep.subr.bf16.mxu0 0
      %1024 = vmatpush1.bf16.xpose.msra.mxu0 0
      %1025 = vmatprep.subr.bf16.mxu0 0
      %1026 = vmatpush1.bf16.xpose.msra.mxu0 0
      %1027 = vmatprep.subr.bf16.mxu0 0
      %1028 = vmatpush1.bf16.xpose.msra.mxu0 0
      %1029 = vmatprep.subr.bf16.mxu0 0
      %1030 = vmatpush1.bf16.xpose.msra.mxu0 0
      %1031 = vmatprep.subr.bf16.mxu0 0
      %1032 = vmatpush1.bf16.xpose.msra.mxu0 0
      %1033 = vmatprep.subr.bf16.mxu0 0
      %1034 = vmatpush1.bf16.xpose.msra.mxu0 %v1017
      %1035 = vmatprep.subr.bf16.mxu0 0
      %1036 = vmatpush2.bf16.xpose.msra.mxu0 0
      %1037 = vmatprep.subr.bf16.mxu0 0
      %1038 = vmatpush2.bf16.xpose.msra.mxu0 0
      %1039 = vmatprep.subr.bf16.mxu0 0
      %1040 = vmatpush2.bf16.xpose.msra.mxu0 0
      %1041 = vmatprep.subr.bf16.mxu0 0
      %1042 = vmatpush2.bf16.xpose.msra.mxu0 0
      %1043 = vmatprep.subr.bf16.mxu0 0
      %1044 = vmatpush2.bf16.xpose.msra.mxu0 0
      %1045 = vmatprep.subr.bf16.mxu0 0
      %1046 = vmatpush2.bf16.xpose.msra.mxu0 0
      %1047 = vmatprep.subr.bf16.mxu0 0
      %1048 = vmatpush2.bf16.xpose.msra.mxu0 0
      %1049 = vmatprep.subr.bf16.mxu0 0
      %1050 = vmatpush2.bf16.xpose.msra.mxu0 0
      %1051 = vmatprep.mubr.bf16.mxu0 0
      %1052 = vmatmul.mubr.bf16.gmra.mxu0 %v1014
      %v1053 = vpop.f32.mrf.mxu0
      %v1054 = vadd.f32 %v905, %v1053
      %v1055 = vpop.f32.mrf.mxu0
      %v1056 = vpop.f32.mrf.mxu0
      %v1057 = vadd.f32 %v906, %v1056
      %v1058 = vpop.f32.mrf.mxu0
      %1059 = vdwg.mxu0
      %1060 = vrot.lane.b32.xlu0 %v407, 120
      %v1061 = vpop.permute.xlu0 %1060
      %1062 = vrot.lane.b32.xlu0 %v407, 88
      %v1063 = vpop.permute.xlu0 %1062
      %v1065 = vsel %vm413, %v1061, 0
      %v1068 = vsel %vm413, %v1063, 0
      %1070 = vmatprep.subr.bf16.mxu0 0
      %1071 = vmatpush1.bf16.xpose.msra.mxu0 0
      %1072 = vmatprep.subr.bf16.mxu0 0
      %1073 = vmatpush1.bf16.xpose.msra.mxu0 0
      %1074 = vmatprep.subr.bf16.mxu0 0
      %1075 = vmatpush1.bf16.xpose.msra.mxu0 0
      %1076 = vmatprep.subr.bf16.mxu0 0
      %1077 = vmatpush1.bf16.xpose.msra.mxu0 0
      %1078 = vmatprep.subr.bf16.mxu0 0
      %1079 = vmatpush1.bf16.xpose.msra.mxu0 0
      %1080 = vmatprep.subr.bf16.mxu0 0
      %1081 = vmatpush1.bf16.xpose.msra.mxu0 0
      %1082 = vmatprep.subr.bf16.mxu0 0
      %1083 = vmatpush1.bf16.xpose.msra.mxu0 0
      %1084 = vmatprep.subr.bf16.mxu0 0
      %1085 = vmatpush1.bf16.xpose.msra.mxu0 %v1068
      %1086 = vmatprep.subr.bf16.mxu0 0
      %1087 = vmatpush2.bf16.xpose.msra.mxu0 0
      %1088 = vmatprep.subr.bf16.mxu0 0
      %1089 = vmatpush2.bf16.xpose.msra.mxu0 0
      %1090 = vmatprep.subr.bf16.mxu0 0
      %1091 = vmatpush2.bf16.xpose.msra.mxu0 0
      %1092 = vmatprep.subr.bf16.mxu0 0
      %1093 = vmatpush2.bf16.xpose.msra.mxu0 0
      %1094 = vmatprep.subr.bf16.mxu0 0
      %1095 = vmatpush2.bf16.xpose.msra.mxu0 0
      %1096 = vmatprep.subr.bf16.mxu0 0
      %1097 = vmatpush2.bf16.xpose.msra.mxu0 0
      %1098 = vmatprep.subr.bf16.mxu0 0
      %1099 = vmatpush2.bf16.xpose.msra.mxu0 0
      %1100 = vmatprep.subr.bf16.mxu0 0
      %1101 = vmatpush2.bf16.xpose.msra.mxu0 0
      %1102 = vmatprep.mubr.bf16.mxu0 0
      %1103 = vmatmul.mubr.bf16.gmra.mxu0 %v1065
      %v1104 = vpop.f32.mrf.mxu0
      %v1105 = vadd.f32 %v905, %v1104
      %v1106 = vpop.f32.mrf.mxu0
      %v1107 = vpop.f32.mrf.mxu0
      %v1108 = vadd.f32 %v906, %v1107
      %v1109 = vpop.f32.mrf.mxu0
      %1110 = vdwg.mxu0
      %v1111 = vadd.f32 %v952, %v295
      %v1112 = vadd.f32 %v955, %v296
      %v1113 = vadd.f32 %v1003, %v297
      %v1114 = vadd.f32 %v1006, %v298
      %v1115 = vadd.f32 %v1054, %v299
      %v1116 = vadd.f32 %v1057, %v300
      %v1117 = vadd.f32 %v1105, %v301
      %v1118 = vadd.f32 %v1108, %v302
      %v1119 = vsel %vm619, %v1111, -inf
      %1120 = vmax.xlane.f32.xlu0 %v1119
      %v1121 = vpop.xlane.xlu0 %1120
      %v1122 = vsel %vm619, %v1112, -inf
      %1123 = vmax.xlane.f32.xlu0 %v1122
      %v1124 = vpop.xlane.xlu0 %1123
      %v1125 = vsel %vm619, %v1113, -inf
      %1126 = vmax.xlane.f32.xlu0 %v1125
      %v1127 = vpop.xlane.xlu0 %1126
      %v1128 = vsel %vm619, %v1114, -inf
      %1129 = vmax.xlane.f32.xlu0 %v1128
      %v1130 = vpop.xlane.xlu0 %1129
      %v1131 = vsel %vm619, %v1115, -inf
      %1132 = vmax.xlane.f32.xlu0 %v1131
      %v1133 = vpop.xlane.xlu0 %1132
      %v1134 = vsel %vm619, %v1116, -inf
      %1135 = vmax.xlane.f32.xlu0 %v1134
      %v1136 = vpop.xlane.xlu0 %1135
      %v1137 = vsel %vm619, %v1117, -inf
      %1138 = vmax.xlane.f32.xlu0 %v1137
      %v1139 = vpop.xlane.xlu0 %1138
      %v1140 = vsel %vm619, %v1118, -inf
      %1141 = vmax.xlane.f32.xlu0 %v1140
      %v1142 = vpop.xlane.xlu0 %1141
      %v1143 = vsub.f32 %v1111, %v1121
      %v1144 = vsub.f32 %v1112, %v1124
      %v1145 = vsub.f32 %v1113, %v1127
      %v1146 = vsub.f32 %v1114, %v1130
      %v1147 = vsub.f32 %v1115, %v1133
      %v1148 = vsub.f32 %v1116, %v1136
      %v1149 = vsub.f32 %v1117, %v1139
      %v1150 = vsub.f32 %v1118, %v1142
      %v1151 = vmul.f32 %v1143, 1.442695
      %v1152 = vpow.pop %v1151
      %v1153 = vmul.f32 %v1144, 1.442695
      %v1154 = vpow.pop %v1153
      %v1155 = vmul.f32 %v1145, 1.442695
      %v1156 = vpow.pop %v1155
      %v1157 = vmul.f32 %v1146, 1.442695
      %v1158 = vpow.pop %v1157
      %v1159 = vmul.f32 %v1147, 1.442695
      %v1160 = vpow.pop %v1159
      %v1161 = vmul.f32 %v1148, 1.442695
      %v1162 = vpow.pop %v1161
      %v1163 = vmul.f32 %v1149, 1.442695
      %v1164 = vpow.pop %v1163
      %v1165 = vmul.f32 %v1150, 1.442695
      %v1166 = vpow.pop %v1165
      %v1167 = vsel %vm619, %v1152, 0.0
      %1168 = vadd.xlane.f32.xlu0 %v1167
      %v1169 = vpop.xlane.xlu0 %1168
      %v1170 = vsel %vm619, %v1154, 0.0
      %1171 = vadd.xlane.f32.xlu0 %v1170
      %v1172 = vpop.xlane.xlu0 %1171
      %v1173 = vsel %vm619, %v1156, 0.0
      %1174 = vadd.xlane.f32.xlu0 %v1173
      %v1175 = vpop.xlane.xlu0 %1174
      %v1176 = vsel %vm619, %v1158, 0.0
      %1177 = vadd.xlane.f32.xlu0 %v1176
      %v1178 = vpop.xlane.xlu0 %1177
      %v1179 = vsel %vm619, %v1160, 0.0
      %1180 = vadd.xlane.f32.xlu0 %v1179
      %v1181 = vpop.xlane.xlu0 %1180
      %v1182 = vsel %vm619, %v1162, 0.0
      %1183 = vadd.xlane.f32.xlu0 %v1182
      %v1184 = vpop.xlane.xlu0 %1183
      %v1185 = vsel %vm619, %v1164, 0.0
      %1186 = vadd.xlane.f32.xlu0 %v1185
      %v1187 = vpop.xlane.xlu0 %1186
      %v1188 = vsel %vm619, %v1166, 0.0
      %1189 = vadd.xlane.f32.xlu0 %v1188
      %v1190 = vpop.xlane.xlu0 %1189
      %v1191 = vrcp.pop %v1169
      %v1192 = vrcp.pop %v1172
      %v1193 = vrcp.pop %v1175
      %v1194 = vrcp.pop %v1178
      %v1195 = vrcp.pop %v1181
      %v1196 = vrcp.pop %v1184
      %v1197 = vrcp.pop %v1187
      %v1198 = vrcp.pop %v1190
      %v1199 = vmul.f32 %v1152, %v1191
      %v1200 = vmul.f32 %v1154, %v1192
      %v1201 = vmul.f32 %v1156, %v1193
      %v1202 = vmul.f32 %v1158, %v1194
      %v1203 = vmul.f32 %v1160, %v1195
      %v1204 = vmul.f32 %v1162, %v1196
      %v1205 = vmul.f32 %v1164, %v1197
      %v1206 = vmul.f32 %v1166, %v1198
      %v1207 = vpack.c.bf16 %v1200, %v1199
      %v1208 = vpack.c.bf16 %v1202, %v1201
      %v1209 = vpack.c.bf16 %v1204, %v1203
      %v1210 = vpack.c.bf16 %v1206, %v1205
      %1211 = vrot.lane.b32.xlu0 %v404, 56
      %v1212 = vpop.permute.xlu0 %1211
      %v1215 = vsel %vm619, %v1207, 0
      %1217 = vmatprep.subr.bf16.mxu0 0
      %1218 = vmatpush1.bf16.msra.mxu0 0
      %1219 = vmatprep.subr.bf16.mxu0 0
      %1220 = vmatpush1.bf16.msra.mxu0 0
      %1221 = vmatprep.subr.bf16.mxu0 0
      %1222 = vmatpush1.bf16.msra.mxu0 0
      %1223 = vmatprep.subr.bf16.mxu0 0
      %1224 = vmatpush1.bf16.msra.mxu0 0
      %1225 = vmatprep.subr.bf16.mxu0 0
      %1226 = vmatpush1.bf16.msra.mxu0 0
      %1227 = vmatprep.subr.bf16.mxu0 0
      %1228 = vmatpush1.bf16.msra.mxu0 0
      %1229 = vmatprep.subr.bf16.mxu0 0
      %1230 = vmatpush1.bf16.msra.mxu0 0
      %1231 = vmatprep.subr.bf16.mxu0 0
      %1232 = vmatpush1.bf16.msra.mxu0 %v1212
      %1233 = vmatprep.subr.bf16.mxu0 0
      %1234 = vmatpush2.bf16.msra.mxu0 0
      %1235 = vmatprep.subr.bf16.mxu0 0
      %1236 = vmatpush2.bf16.msra.mxu0 0
      %1237 = vmatprep.subr.bf16.mxu0 0
      %1238 = vmatpush2.bf16.msra.mxu0 0
      %1239 = vmatprep.subr.bf16.mxu0 0
      %1240 = vmatpush2.bf16.msra.mxu0 0
      %1241 = vmatprep.subr.bf16.mxu0 0
      %1242 = vmatpush2.bf16.msra.mxu0 0
      %1243 = vmatprep.subr.bf16.mxu0 0
      %1244 = vmatpush2.bf16.msra.mxu0 0
      %1245 = vmatprep.subr.bf16.mxu0 0
      %1246 = vmatpush2.bf16.msra.mxu0 0
      %1247 = vmatprep.subr.bf16.mxu0 0
      %1248 = vmatpush2.bf16.msra.mxu0 0
      %1249 = vmatprep.mubr.bf16.mxu0 0
      %1250 = vmatmul.mubr.bf16.gmra.mxu0 %v1215
      %v1251 = vpop.f32.mrf.mxu0
      %v1252 = vadd.f32 0.0, %v1251
      %v1253 = vpop.f32.mrf.mxu0
      %v1254 = vpop.f32.mrf.mxu0
      %v1255 = vadd.f32 0.0, %v1254
      %v1256 = vpop.f32.mrf.mxu0
      %1257 = vdwg.mxu0
      %1258 = vrot.lane.b32.xlu0 %v405, 56
      %v1259 = vpop.permute.xlu0 %1258
      %v1262 = vsel %vm619, %v1208, 0
      %1264 = vmatprep.subr.bf16.mxu0 0
      %1265 = vmatpush1.bf16.msra.mxu0 0
      %1266 = vmatprep.subr.bf16.mxu0 0
      %1267 = vmatpush1.bf16.msra.mxu0 0
      %1268 = vmatprep.subr.bf16.mxu0 0
      %1269 = vmatpush1.bf16.msra.mxu0 0
      %1270 = vmatprep.subr.bf16.mxu0 0
      %1271 = vmatpush1.bf16.msra.mxu0 0
      %1272 = vmatprep.subr.bf16.mxu0 0
      %1273 = vmatpush1.bf16.msra.mxu0 0
      %1274 = vmatprep.subr.bf16.mxu0 0
      %1275 = vmatpush1.bf16.msra.mxu0 0
      %1276 = vmatprep.subr.bf16.mxu0 0
      %1277 = vmatpush1.bf16.msra.mxu0 0
      %1278 = vmatprep.subr.bf16.mxu0 0
      %1279 = vmatpush1.bf16.msra.mxu0 %v1259
      %1280 = vmatprep.subr.bf16.mxu0 0
      %1281 = vmatpush2.bf16.msra.mxu0 0
      %1282 = vmatprep.subr.bf16.mxu0 0
      %1283 = vmatpush2.bf16.msra.mxu0 0
      %1284 = vmatprep.subr.bf16.mxu0 0
      %1285 = vmatpush2.bf16.msra.mxu0 0
      %1286 = vmatprep.subr.bf16.mxu0 0
      %1287 = vmatpush2.bf16.msra.mxu0 0
      %1288 = vmatprep.subr.bf16.mxu0 0
      %1289 = vmatpush2.bf16.msra.mxu0 0
      %1290 = vmatprep.subr.bf16.mxu0 0
      %1291 = vmatpush2.bf16.msra.mxu0 0
      %1292 = vmatprep.subr.bf16.mxu0 0
      %1293 = vmatpush2.bf16.msra.mxu0 0
      %1294 = vmatprep.subr.bf16.mxu0 0
      %1295 = vmatpush2.bf16.msra.mxu0 0
      %1296 = vmatprep.mubr.bf16.mxu0 0
      %1297 = vmatmul.mubr.bf16.gmra.mxu0 %v1262
      %v1298 = vpop.f32.mrf.mxu0
      %v1299 = vadd.f32 0.0, %v1298
      %v1300 = vpop.f32.mrf.mxu0
      %v1301 = vpop.f32.mrf.mxu0
      %v1302 = vadd.f32 0.0, %v1301
      %v1303 = vpop.f32.mrf.mxu0
      %1304 = vdwg.mxu0
      %1305 = vrot.lane.b32.xlu0 %v406, 56
      %v1306 = vpop.permute.xlu0 %1305
      %v1309 = vsel %vm619, %v1209, 0
      %1311 = vmatprep.subr.bf16.mxu0 0
      %1312 = vmatpush1.bf16.msra.mxu0 0
      %1313 = vmatprep.subr.bf16.mxu0 0
      %1314 = vmatpush1.bf16.msra.mxu0 0
      %1315 = vmatprep.subr.bf16.mxu0 0
      %1316 = vmatpush1.bf16.msra.mxu0 0
      %1317 = vmatprep.subr.bf16.mxu0 0
      %1318 = vmatpush1.bf16.msra.mxu0 0
      %1319 = vmatprep.subr.bf16.mxu0 0
      %1320 = vmatpush1.bf16.msra.mxu0 0
      %1321 = vmatprep.subr.bf16.mxu0 0
      %1322 = vmatpush1.bf16.msra.mxu0 0
      %1323 = vmatprep.subr.bf16.mxu0 0
      %1324 = vmatpush1.bf16.msra.mxu0 0
      %1325 = vmatprep.subr.bf16.mxu0 0
      %1326 = vmatpush1.bf16.msra.mxu0 %v1306
      %1327 = vmatprep.subr.bf16.mxu0 0
      %1328 = vmatpush2.bf16.msra.mxu0 0
      %1329 = vmatprep.subr.bf16.mxu0 0
      %1330 = vmatpush2.bf16.msra.mxu0 0
      %1331 = vmatprep.subr.bf16.mxu0 0
      %1332 = vmatpush2.bf16.msra.mxu0 0
      %1333 = vmatprep.subr.bf16.mxu0 0
      %1334 = vmatpush2.bf16.msra.mxu0 0
      %1335 = vmatprep.subr.bf16.mxu0 0
      %1336 = vmatpush2.bf16.msra.mxu0 0
      %1337 = vmatprep.subr.bf16.mxu0 0
      %1338 = vmatpush2.bf16.msra.mxu0 0
      %1339 = vmatprep.subr.bf16.mxu0 0
      %1340 = vmatpush2.bf16.msra.mxu0 0
      %1341 = vmatprep.subr.bf16.mxu0 0
      %1342 = vmatpush2.bf16.msra.mxu0 0
      %1343 = vmatprep.mubr.bf16.mxu0 0
      %1344 = vmatmul.mubr.bf16.gmra.mxu0 %v1309
      %v1345 = vpop.f32.mrf.mxu0
      %v1346 = vadd.f32 0.0, %v1345
      %v1347 = vpop.f32.mrf.mxu0
      %v1348 = vpop.f32.mrf.mxu0
      %v1349 = vadd.f32 0.0, %v1348
      %v1350 = vpop.f32.mrf.mxu0
      %1351 = vdwg.mxu0
      %1352 = vrot.lane.b32.xlu0 %v407, 56
      %v1353 = vpop.permute.xlu0 %1352
      %v1356 = vsel %vm619, %v1210, 0
      %1358 = vmatprep.subr.bf16.mxu0 0
      %1359 = vmatpush1.bf16.msra.mxu0 0
      %1360 = vmatprep.subr.bf16.mxu0 0
      %1361 = vmatpush1.bf16.msra.mxu0 0
      %1362 = vmatprep.subr.bf16.mxu0 0
      %1363 = vmatpush1.bf16.msra.mxu0 0
      %1364 = vmatprep.subr.bf16.mxu0 0
      %1365 = vmatpush1.bf16.msra.mxu0 0
      %1366 = vmatprep.subr.bf16.mxu0 0
      %1367 = vmatpush1.bf16.msra.mxu0 0
      %1368 = vmatprep.subr.bf16.mxu0 0
      %1369 = vmatpush1.bf16.msra.mxu0 0
      %1370 = vmatprep.subr.bf16.mxu0 0
      %1371 = vmatpush1.bf16.msra.mxu0 0
      %1372 = vmatprep.subr.bf16.mxu0 0
      %1373 = vmatpush1.bf16.msra.mxu0 %v1353
      %1374 = vmatprep.subr.bf16.mxu0 0
      %1375 = vmatpush2.bf16.msra.mxu0 0
      %1376 = vmatprep.subr.bf16.mxu0 0
      %1377 = vmatpush2.bf16.msra.mxu0 0
      %1378 = vmatprep.subr.bf16.mxu0 0
      %1379 = vmatpush2.bf16.msra.mxu0 0
      %1380 = vmatprep.subr.bf16.mxu0 0
      %1381 = vmatpush2.bf16.msra.mxu0 0
      %1382 = vmatprep.subr.bf16.mxu0 0
      %1383 = vmatpush2.bf16.msra.mxu0 0
      %1384 = vmatprep.subr.bf16.mxu0 0
      %1385 = vmatpush2.bf16.msra.mxu0 0
      %1386 = vmatprep.subr.bf16.mxu0 0
      %1387 = vmatpush2.bf16.msra.mxu0 0
      %1388 = vmatprep.subr.bf16.mxu0 0
      %1389 = vmatpush2.bf16.msra.mxu0 0
      %1390 = vmatprep.mubr.bf16.mxu0 0
      %1391 = vmatmul.mubr.bf16.gmra.mxu0 %v1356
      %v1392 = vpop.f32.mrf.mxu0
      %v1393 = vadd.f32 0.0, %v1392
      %v1394 = vpop.f32.mrf.mxu0
      %v1395 = vpop.f32.mrf.mxu0
      %v1396 = vadd.f32 0.0, %v1395
      %v1397 = vpop.f32.mrf.mxu0
      %1398 = vdwg.mxu0
      %v1399 = vpack.c.bf16 %v1255, %v1252
      %v1400 = vpack.c.bf16 %v1302, %v1299
      %v1401 = vpack.c.bf16 %v1349, %v1346
      %v1402 = vpack.c.bf16 %v1396, %v1393
      %s1403 = scalar_lea.vmem %s4, 32
      %v1404 = vld [vmem:[%s1403] sm:$0xff]
      %v1405 = vld [vmem:[%s1403 + $0x8] sm:$0xff]
      %1406 = vrot.lane.b32.xlu0 %v404, 112
      %v1407 = vpop.permute.xlu0 %1406
      %1408 = vrot.lane.b32.xlu0 %v404, 80
      %v1409 = vpop.permute.xlu0 %1408
      %v1411 = vsel %vm413, %v1407, 0
      %v1414 = vsel %vm413, %v1409, 0
      %1416 = vmatprep.subr.bf16.mxu0 0
      %1417 = vmatpush1.bf16.xpose.msra.mxu0 0
      %1418 = vmatprep.subr.bf16.mxu0 0
      %1419 = vmatpush1.bf16.xpose.msra.mxu0 0
      %1420 = vmatprep.subr.bf16.mxu0 0
      %1421 = vmatpush1.bf16.xpose.msra.mxu0 0
      %1422 = vmatprep.subr.bf16.mxu0 0
      %1423 = vmatpush1.bf16.xpose.msra.mxu0 0
      %1424 = vmatprep.subr.bf16.mxu0 0
      %1425 = vmatpush1.bf16.xpose.msra.mxu0 0
      %1426 = vmatprep.subr.bf16.mxu0 0
      %1427 = vmatpush1.bf16.xpose.msra.mxu0 0
      %1428 = vmatprep.subr.bf16.mxu0 0
      %1429 = vmatpush1.bf16.xpose.msra.mxu0 0
      %1430 = vmatprep.subr.bf16.mxu0 0
      %1431 = vmatpush1.bf16.xpose.msra.mxu0 %v1414
      %1432 = vmatprep.subr.bf16.mxu0 0
      %1433 = vmatpush2.bf16.xpose.msra.mxu0 0
      %1434 = vmatprep.subr.bf16.mxu0 0
      %1435 = vmatpush2.bf16.xpose.msra.mxu0 0
      %1436 = vmatprep.subr.bf16.mxu0 0
      %1437 = vmatpush2.bf16.xpose.msra.mxu0 0
      %1438 = vmatprep.subr.bf16.mxu0 0
      %1439 = vmatpush2.bf16.xpose.msra.mxu0 0
      %1440 = vmatprep.subr.bf16.mxu0 0
      %1441 = vmatpush2.bf16.xpose.msra.mxu0 0
      %1442 = vmatprep.subr.bf16.mxu0 0
      %1443 = vmatpush2.bf16.xpose.msra.mxu0 0
      %1444 = vmatprep.subr.bf16.mxu0 0
      %1445 = vmatpush2.bf16.xpose.msra.mxu0 0
      %1446 = vmatprep.subr.bf16.mxu0 0
      %1447 = vmatpush2.bf16.xpose.msra.mxu0 0
      %1448 = vmatprep.mubr.bf16.mxu0 0
      %1449 = vmatmul.mubr.bf16.gmra.mxu0 %v1411
      %v1450 = vpop.f32.mrf.mxu0
      %v1451 = vadd.f32 %v1404, %v1450
      %v1452 = vpop.f32.mrf.mxu0
      %v1453 = vpop.f32.mrf.mxu0
      %v1454 = vadd.f32 %v1405, %v1453
      %v1455 = vpop.f32.mrf.mxu0
      %1456 = vdwg.mxu0
      %1457 = vrot.lane.b32.xlu0 %v405, 112
      %v1458 = vpop.permute.xlu0 %1457
      %1459 = vrot.lane.b32.xlu0 %v405, 80
      %v1460 = vpop.permute.xlu0 %1459
      %v1462 = vsel %vm413, %v1458, 0
      %v1465 = vsel %vm413, %v1460, 0
      %1467 = vmatprep.subr.bf16.mxu0 0
      %1468 = vmatpush1.bf16.xpose.msra.mxu0 0
      %1469 = vmatprep.subr.bf16.mxu0 0
      %1470 = vmatpush1.bf16.xpose.msra.mxu0 0
      %1471 = vmatprep.subr.bf16.mxu0 0
      %1472 = vmatpush1.bf16.xpose.msra.mxu0 0
      %1473 = vmatprep.subr.bf16.mxu0 0
      %1474 = vmatpush1.bf16.xpose.msra.mxu0 0
      %1475 = vmatprep.subr.bf16.mxu0 0
      %1476 = vmatpush1.bf16.xpose.msra.mxu0 0
      %1477 = vmatprep.subr.bf16.mxu0 0
      %1478 = vmatpush1.bf16.xpose.msra.mxu0 0
      %1479 = vmatprep.subr.bf16.mxu0 0
      %1480 = vmatpush1.bf16.xpose.msra.mxu0 0
      %1481 = vmatprep.subr.bf16.mxu0 0
      %1482 = vmatpush1.bf16.xpose.msra.mxu0 %v1465
      %1483 = vmatprep.subr.bf16.mxu0 0
      %1484 = vmatpush2.bf16.xpose.msra.mxu0 0
      %1485 = vmatprep.subr.bf16.mxu0 0
      %1486 = vmatpush2.bf16.xpose.msra.mxu0 0
      %1487 = vmatprep.subr.bf16.mxu0 0
      %1488 = vmatpush2.bf16.xpose.msra.mxu0 0
      %1489 = vmatprep.subr.bf16.mxu0 0
      %1490 = vmatpush2.bf16.xpose.msra.mxu0 0
      %1491 = vmatprep.subr.bf16.mxu0 0
      %1492 = vmatpush2.bf16.xpose.msra.mxu0 0
      %1493 = vmatprep.subr.bf16.mxu0 0
      %1494 = vmatpush2.bf16.xpose.msra.mxu0 0
      %1495 = vmatprep.subr.bf16.mxu0 0
      %1496 = vmatpush2.bf16.xpose.msra.mxu0 0
      %1497 = vmatprep.subr.bf16.mxu0 0
      %1498 = vmatpush2.bf16.xpose.msra.mxu0 0
      %1499 = vmatprep.mubr.bf16.mxu0 0
      %1500 = vmatmul.mubr.bf16.gmra.mxu0 %v1462
      %v1501 = vpop.f32.mrf.mxu0
      %v1502 = vadd.f32 %v1404, %v1501
      %v1503 = vpop.f32.mrf.mxu0
      %v1504 = vpop.f32.mrf.mxu0
      %v1505 = vadd.f32 %v1405, %v1504
      %v1506 = vpop.f32.mrf.mxu0
      %1507 = vdwg.mxu0
      %1508 = vrot.lane.b32.xlu0 %v406, 112
      %v1509 = vpop.permute.xlu0 %1508
      %1510 = vrot.lane.b32.xlu0 %v406, 80
      %v1511 = vpop.permute.xlu0 %1510
      %v1513 = vsel %vm413, %v1509, 0
      %v1516 = vsel %vm413, %v1511, 0
      %1518 = vmatprep.subr.bf16.mxu0 0
      %1519 = vmatpush1.bf16.xpose.msra.mxu0 0
      %1520 = vmatprep.subr.bf16.mxu0 0
      %1521 = vmatpush1.bf16.xpose.msra.mxu0 0
      %1522 = vmatprep.subr.bf16.mxu0 0
      %1523 = vmatpush1.bf16.xpose.msra.mxu0 0
      %1524 = vmatprep.subr.bf16.mxu0 0
      %1525 = vmatpush1.bf16.xpose.msra.mxu0 0
      %1526 = vmatprep.subr.bf16.mxu0 0
      %1527 = vmatpush1.bf16.xpose.msra.mxu0 0
      %1528 = vmatprep.subr.bf16.mxu0 0
      %1529 = vmatpush1.bf16.xpose.msra.mxu0 0
      %1530 = vmatprep.subr.bf16.mxu0 0
      %1531 = vmatpush1.bf16.xpose.msra.mxu0 0
      %1532 = vmatprep.subr.bf16.mxu0 0
      %1533 = vmatpush1.bf16.xpose.msra.mxu0 %v1516
      %1534 = vmatprep.subr.bf16.mxu0 0
      %1535 = vmatpush2.bf16.xpose.msra.mxu0 0
      %1536 = vmatprep.subr.bf16.mxu0 0
      %1537 = vmatpush2.bf16.xpose.msra.mxu0 0
      %1538 = vmatprep.subr.bf16.mxu0 0
      %1539 = vmatpush2.bf16.xpose.msra.mxu0 0
      %1540 = vmatprep.subr.bf16.mxu0 0
      %1541 = vmatpush2.bf16.xpose.msra.mxu0 0
      %1542 = vmatprep.subr.bf16.mxu0 0
      %1543 = vmatpush2.bf16.xpose.msra.mxu0 0
      %1544 = vmatprep.subr.bf16.mxu0 0
      %1545 = vmatpush2.bf16.xpose.msra.mxu0 0
      %1546 = vmatprep.subr.bf16.mxu0 0
      %1547 = vmatpush2.bf16.xpose.msra.mxu0 0
      %1548 = vmatprep.subr.bf16.mxu0 0
      %1549 = vmatpush2.bf16.xpose.msra.mxu0 0
      %1550 = vmatprep.mubr.bf16.mxu0 0
      %1551 = vmatmul.mubr.bf16.gmra.mxu0 %v1513
      %v1552 = vpop.f32.mrf.mxu0
      %v1553 = vadd.f32 %v1404, %v1552
      %v1554 = vpop.f32.mrf.mxu0
      %v1555 = vpop.f32.mrf.mxu0
      %v1556 = vadd.f32 %v1405, %v1555
      %v1557 = vpop.f32.mrf.mxu0
      %1558 = vdwg.mxu0
      %1559 = vrot.lane.b32.xlu0 %v407, 112
      %v1560 = vpop.permute.xlu0 %1559
      %1561 = vrot.lane.b32.xlu0 %v407, 80
      %v1562 = vpop.permute.xlu0 %1561
      %v1564 = vsel %vm413, %v1560, 0
      %v1567 = vsel %vm413, %v1562, 0
      %1569 = vmatprep.subr.bf16.mxu0 0
      %1570 = vmatpush1.bf16.xpose.msra.mxu0 0
      %1571 = vmatprep.subr.bf16.mxu0 0
      %1572 = vmatpush1.bf16.xpose.msra.mxu0 0
      %1573 = vmatprep.subr.bf16.mxu0 0
      %1574 = vmatpush1.bf16.xpose.msra.mxu0 0
      %1575 = vmatprep.subr.bf16.mxu0 0
      %1576 = vmatpush1.bf16.xpose.msra.mxu0 0
      %1577 = vmatprep.subr.bf16.mxu0 0
      %1578 = vmatpush1.bf16.xpose.msra.mxu0 0
      %1579 = vmatprep.subr.bf16.mxu0 0
      %1580 = vmatpush1.bf16.xpose.msra.mxu0 0
      %1581 = vmatprep.subr.bf16.mxu0 0
      %1582 = vmatpush1.bf16.xpose.msra.mxu0 0
      %1583 = vmatprep.subr.bf16.mxu0 0
      %1584 = vmatpush1.bf16.xpose.msra.mxu0 %v1567
      %1585 = vmatprep.subr.bf16.mxu0 0
      %1586 = vmatpush2.bf16.xpose.msra.mxu0 0
      %1587 = vmatprep.subr.bf16.mxu0 0
      %1588 = vmatpush2.bf16.xpose.msra.mxu0 0
      %1589 = vmatprep.subr.bf16.mxu0 0
      %1590 = vmatpush2.bf16.xpose.msra.mxu0 0
      %1591 = vmatprep.subr.bf16.mxu0 0
      %1592 = vmatpush2.bf16.xpose.msra.mxu0 0
      %1593 = vmatprep.subr.bf16.mxu0 0
      %1594 = vmatpush2.bf16.xpose.msra.mxu0 0
      %1595 = vmatprep.subr.bf16.mxu0 0
      %1596 = vmatpush2.bf16.xpose.msra.mxu0 0
      %1597 = vmatprep.subr.bf16.mxu0 0
      %1598 = vmatpush2.bf16.xpose.msra.mxu0 0
      %1599 = vmatprep.subr.bf16.mxu0 0
      %1600 = vmatpush2.bf16.xpose.msra.mxu0 0
      %1601 = vmatprep.mubr.bf16.mxu0 0
      %1602 = vmatmul.mubr.bf16.gmra.mxu0 %v1564
      %v1603 = vpop.f32.mrf.mxu0
      %v1604 = vadd.f32 %v1404, %v1603
      %v1605 = vpop.f32.mrf.mxu0
      %v1606 = vpop.f32.mrf.mxu0
      %v1607 = vadd.f32 %v1405, %v1606
      %v1608 = vpop.f32.mrf.mxu0
      %1609 = vdwg.mxu0
      %v1610 = vadd.f32 %v1451, %v295
      %v1611 = vadd.f32 %v1454, %v296
      %v1612 = vadd.f32 %v1502, %v297
      %v1613 = vadd.f32 %v1505, %v298
      %v1614 = vadd.f32 %v1553, %v299
      %v1615 = vadd.f32 %v1556, %v300
      %v1616 = vadd.f32 %v1604, %v301
      %v1617 = vadd.f32 %v1607, %v302
      %v1618 = vsel %vm619, %v1610, -inf
      %1619 = vmax.xlane.f32.xlu0 %v1618
      %v1620 = vpop.xlane.xlu0 %1619
      %v1621 = vsel %vm619, %v1611, -inf
      %1622 = vmax.xlane.f32.xlu0 %v1621
      %v1623 = vpop.xlane.xlu0 %1622
      %v1624 = vsel %vm619, %v1612, -inf
      %1625 = vmax.xlane.f32.xlu0 %v1624
      %v1626 = vpop.xlane.xlu0 %1625
      %v1627 = vsel %vm619, %v1613, -inf
      %1628 = vmax.xlane.f32.xlu0 %v1627
      %v1629 = vpop.xlane.xlu0 %1628
      %v1630 = vsel %vm619, %v1614, -inf
      %1631 = vmax.xlane.f32.xlu0 %v1630
      %v1632 = vpop.xlane.xlu0 %1631
      %v1633 = vsel %vm619, %v1615, -inf
      %1634 = vmax.xlane.f32.xlu0 %v1633
      %v1635 = vpop.xlane.xlu0 %1634
      %v1636 = vsel %vm619, %v1616, -inf
      %1637 = vmax.xlane.f32.xlu0 %v1636
      %v1638 = vpop.xlane.xlu0 %1637
      %v1639 = vsel %vm619, %v1617, -inf
      %1640 = vmax.xlane.f32.xlu0 %v1639
      %v1641 = vpop.xlane.xlu0 %1640
      %v1642 = vsub.f32 %v1610, %v1620
      %v1643 = vsub.f32 %v1611, %v1623
      %v1644 = vsub.f32 %v1612, %v1626
      %v1645 = vsub.f32 %v1613, %v1629
      %v1646 = vsub.f32 %v1614, %v1632
      %v1647 = vsub.f32 %v1615, %v1635
      %v1648 = vsub.f32 %v1616, %v1638
      %v1649 = vsub.f32 %v1617, %v1641
      %v1650 = vmul.f32 %v1642, 1.442695
      %v1651 = vpow.pop %v1650
      %v1652 = vmul.f32 %v1643, 1.442695
      %v1653 = vpow.pop %v1652
      %v1654 = vmul.f32 %v1644, 1.442695
      %v1655 = vpow.pop %v1654
      %v1656 = vmul.f32 %v1645, 1.442695
      %v1657 = vpow.pop %v1656
      %v1658 = vmul.f32 %v1646, 1.442695
      %v1659 = vpow.pop %v1658
      %v1660 = vmul.f32 %v1647, 1.442695
      %v1661 = vpow.pop %v1660
      %v1662 = vmul.f32 %v1648, 1.442695
      %v1663 = vpow.pop %v1662
      %v1664 = vmul.f32 %v1649, 1.442695
      %v1665 = vpow.pop %v1664
      %v1666 = vsel %vm619, %v1651, 0.0
      %1667 = vadd.xlane.f32.xlu0 %v1666
      %v1668 = vpop.xlane.xlu0 %1667
      %v1669 = vsel %vm619, %v1653, 0.0
      %1670 = vadd.xlane.f32.xlu0 %v1669
      %v1671 = vpop.xlane.xlu0 %1670
      %v1672 = vsel %vm619, %v1655, 0.0
      %1673 = vadd.xlane.f32.xlu0 %v1672
      %v1674 = vpop.xlane.xlu0 %1673
      %v1675 = vsel %vm619, %v1657, 0.0
      %1676 = vadd.xlane.f32.xlu0 %v1675
      %v1677 = vpop.xlane.xlu0 %1676
      %v1678 = vsel %vm619, %v1659, 0.0
      %1679 = vadd.xlane.f32.xlu0 %v1678
      %v1680 = vpop.xlane.xlu0 %1679
      %v1681 = vsel %vm619, %v1661, 0.0
      %1682 = vadd.xlane.f32.xlu0 %v1681
      %v1683 = vpop.xlane.xlu0 %1682
      %v1684 = vsel %vm619, %v1663, 0.0
      %1685 = vadd.xlane.f32.xlu0 %v1684
      %v1686 = vpop.xlane.xlu0 %1685
      %v1687 = vsel %vm619, %v1665, 0.0
      %1688 = vadd.xlane.f32.xlu0 %v1687
      %v1689 = vpop.xlane.xlu0 %1688
      %v1690 = vrcp.pop %v1668
      %v1691 = vrcp.pop %v1671
      %v1692 = vrcp.pop %v1674
      %v1693 = vrcp.pop %v1677
      %v1694 = vrcp.pop %v1680
      %v1695 = vrcp.pop %v1683
      %v1696 = vrcp.pop %v1686
      %v1697 = vrcp.pop %v1689
      %v1698 = vmul.f32 %v1651, %v1690
      %v1699 = vmul.f32 %v1653, %v1691
      %v1700 = vmul.f32 %v1655, %v1692
      %v1701 = vmul.f32 %v1657, %v1693
      %v1702 = vmul.f32 %v1659, %v1694
      %v1703 = vmul.f32 %v1661, %v1695
      %v1704 = vmul.f32 %v1663, %v1696
      %v1705 = vmul.f32 %v1665, %v1697
      %v1706 = vpack.c.bf16 %v1699, %v1698
      %v1707 = vpack.c.bf16 %v1701, %v1700
      %v1708 = vpack.c.bf16 %v1703, %v1702
      %v1709 = vpack.c.bf16 %v1705, %v1704
      %1710 = vrot.lane.b32.xlu0 %v404, 48
      %v1711 = vpop.permute.xlu0 %1710
      %v1714 = vsel %vm619, %v1706, 0
      %1716 = vmatprep.subr.bf16.mxu0 0
      %1717 = vmatpush1.bf16.msra.mxu0 0
      %1718 = vmatprep.subr.bf16.mxu0 0
      %1719 = vmatpush1.bf16.msra.mxu0 0
      %1720 = vmatprep.subr.bf16.mxu0 0
      %1721 = vmatpush1.bf16.msra.mxu0 0
      %1722 = vmatprep.subr.bf16.mxu0 0
      %1723 = vmatpush1.bf16.msra.mxu0 0
      %1724 = vmatprep.subr.bf16.mxu0 0
      %1725 = vmatpush1.bf16.msra.mxu0 0
      %1726 = vmatprep.subr.bf16.mxu0 0
      %1727 = vmatpush1.bf16.msra.mxu0 0
      %1728 = vmatprep.subr.bf16.mxu0 0
      %1729 = vmatpush1.bf16.msra.mxu0 0
      %1730 = vmatprep.subr.bf16.mxu0 0
      %1731 = vmatpush1.bf16.msra.mxu0 %v1711
      %1732 = vmatprep.subr.bf16.mxu0 0
      %1733 = vmatpush2.bf16.msra.mxu0 0
      %1734 = vmatprep.subr.bf16.mxu0 0
      %1735 = vmatpush2.bf16.msra.mxu0 0
      %1736 = vmatprep.subr.bf16.mxu0 0
      %1737 = vmatpush2.bf16.msra.mxu0 0
      %1738 = vmatprep.subr.bf16.mxu0 0
      %1739 = vmatpush2.bf16.msra.mxu0 0
      %1740 = vmatprep.subr.bf16.mxu0 0
      %1741 = vmatpush2.bf16.msra.mxu0 0
      %1742 = vmatprep.subr.bf16.mxu0 0
      %1743 = vmatpush2.bf16.msra.mxu0 0
      %1744 = vmatprep.subr.bf16.mxu0 0
      %1745 = vmatpush2.bf16.msra.mxu0 0
      %1746 = vmatprep.subr.bf16.mxu0 0
      %1747 = vmatpush2.bf16.msra.mxu0 0
      %1748 = vmatprep.mubr.bf16.mxu0 0
      %1749 = vmatmul.mubr.bf16.gmra.mxu0 %v1714
      %v1750 = vpop.f32.mrf.mxu0
      %v1751 = vadd.f32 0.0, %v1750
      %v1752 = vpop.f32.mrf.mxu0
      %v1753 = vpop.f32.mrf.mxu0
      %v1754 = vadd.f32 0.0, %v1753
      %v1755 = vpop.f32.mrf.mxu0
      %1756 = vdwg.mxu0
      %1757 = vrot.lane.b32.xlu0 %v405, 48
      %v1758 = vpop.permute.xlu0 %1757
      %v1761 = vsel %vm619, %v1707, 0
      %1763 = vmatprep.subr.bf16.mxu0 0
      %1764 = vmatpush1.bf16.msra.mxu0 0
      %1765 = vmatprep.subr.bf16.mxu0 0
      %1766 = vmatpush1.bf16.msra.mxu0 0
      %1767 = vmatprep.subr.bf16.mxu0 0
      %1768 = vmatpush1.bf16.msra.mxu0 0
      %1769 = vmatprep.subr.bf16.mxu0 0
      %1770 = vmatpush1.bf16.msra.mxu0 0
      %1771 = vmatprep.subr.bf16.mxu0 0
      %1772 = vmatpush1.bf16.msra.mxu0 0
      %1773 = vmatprep.subr.bf16.mxu0 0
      %1774 = vmatpush1.bf16.msra.mxu0 0
      %1775 = vmatprep.subr.bf16.mxu0 0
      %1776 = vmatpush1.bf16.msra.mxu0 0
      %1777 = vmatprep.subr.bf16.mxu0 0
      %1778 = vmatpush1.bf16.msra.mxu0 %v1758
      %1779 = vmatprep.subr.bf16.mxu0 0
      %1780 = vmatpush2.bf16.msra.mxu0 0
      %1781 = vmatprep.subr.bf16.mxu0 0
      %1782 = vmatpush2.bf16.msra.mxu0 0
      %1783 = vmatprep.subr.bf16.mxu0 0
      %1784 = vmatpush2.bf16.msra.mxu0 0
      %1785 = vmatprep.subr.bf16.mxu0 0
      %1786 = vmatpush2.bf16.msra.mxu0 0
      %1787 = vmatprep.subr.bf16.mxu0 0
      %1788 = vmatpush2.bf16.msra.mxu0 0
      %1789 = vmatprep.subr.bf16.mxu0 0
      %1790 = vmatpush2.bf16.msra.mxu0 0
      %1791 = vmatprep.subr.bf16.mxu0 0
      %1792 = vmatpush2.bf16.msra.mxu0 0
      %1793 = vmatprep.subr.bf16.mxu0 0
      %1794 = vmatpush2.bf16.msra.mxu0 0
      %1795 = vmatprep.mubr.bf16.mxu0 0
      %1796 = vmatmul.mubr.bf16.gmra.mxu0 %v1761
      %v1797 = vpop.f32.mrf.mxu0
      %v1798 = vadd.f32 0.0, %v1797
      %v1799 = vpop.f32.mrf.mxu0
      %v1800 = vpop.f32.mrf.mxu0
      %v1801 = vadd.f32 0.0, %v1800
      %v1802 = vpop.f32.mrf.mxu0
      %1803 = vdwg.mxu0
      %1804 = vrot.lane.b32.xlu0 %v406, 48
      %v1805 = vpop.permute.xlu0 %1804
      %v1808 = vsel %vm619, %v1708, 0
      %1810 = vmatprep.subr.bf16.mxu0 0
      %1811 = vmatpush1.bf16.msra.mxu0 0
      %1812 = vmatprep.subr.bf16.mxu0 0
      %1813 = vmatpush1.bf16.msra.mxu0 0
      %1814 = vmatprep.subr.bf16.mxu0 0
      %1815 = vmatpush1.bf16.msra.mxu0 0
      %1816 = vmatprep.subr.bf16.mxu0 0
      %1817 = vmatpush1.bf16.msra.mxu0 0
      %1818 = vmatprep.subr.bf16.mxu0 0
      %1819 = vmatpush1.bf16.msra.mxu0 0
      %1820 = vmatprep.subr.bf16.mxu0 0
      %1821 = vmatpush1.bf16.msra.mxu0 0
      %1822 = vmatprep.subr.bf16.mxu0 0
      %1823 = vmatpush1.bf16.msra.mxu0 0
      %1824 = vmatprep.subr.bf16.mxu0 0
      %1825 = vmatpush1.bf16.msra.mxu0 %v1805
      %1826 = vmatprep.subr.bf16.mxu0 0
      %1827 = vmatpush2.bf16.msra.mxu0 0
      %1828 = vmatprep.subr.bf16.mxu0 0
      %1829 = vmatpush2.bf16.msra.mxu0 0
      %1830 = vmatprep.subr.bf16.mxu0 0
      %1831 = vmatpush2.bf16.msra.mxu0 0
      %1832 = vmatprep.subr.bf16.mxu0 0
      %1833 = vmatpush2.bf16.msra.mxu0 0
      %1834 = vmatprep.subr.bf16.mxu0 0
      %1835 = vmatpush2.bf16.msra.mxu0 0
      %1836 = vmatprep.subr.bf16.mxu0 0
      %1837 = vmatpush2.bf16.msra.mxu0 0
      %1838 = vmatprep.subr.bf16.mxu0 0
      %1839 = vmatpush2.bf16.msra.mxu0 0
      %1840 = vmatprep.subr.bf16.mxu0 0
      %1841 = vmatpush2.bf16.msra.mxu0 0
      %1842 = vmatprep.mubr.bf16.mxu0 0
      %1843 = vmatmul.mubr.bf16.gmra.mxu0 %v1808
      %v1844 = vpop.f32.mrf.mxu0
      %v1845 = vadd.f32 0.0, %v1844
      %v1846 = vpop.f32.mrf.mxu0
      %v1847 = vpop.f32.mrf.mxu0
      %v1848 = vadd.f32 0.0, %v1847
      %v1849 = vpop.f32.mrf.mxu0
      %1850 = vdwg.mxu0
      %1851 = vrot.lane.b32.xlu0 %v407, 48
      %v1852 = vpop.permute.xlu0 %1851
      %v1855 = vsel %vm619, %v1709, 0
      %1857 = vmatprep.subr.bf16.mxu0 0
      %1858 = vmatpush1.bf16.msra.mxu0 0
      %1859 = vmatprep.subr.bf16.mxu0 0
      %1860 = vmatpush1.bf16.msra.mxu0 0
      %1861 = vmatprep.subr.bf16.mxu0 0
      %1862 = vmatpush1.bf16.msra.mxu0 0
      %1863 = vmatprep.subr.bf16.mxu0 0
      %1864 = vmatpush1.bf16.msra.mxu0 0
      %1865 = vmatprep.subr.bf16.mxu0 0
      %1866 = vmatpush1.bf16.msra.mxu0 0
      %1867 = vmatprep.subr.bf16.mxu0 0
      %1868 = vmatpush1.bf16.msra.mxu0 0
      %1869 = vmatprep.subr.bf16.mxu0 0
      %1870 = vmatpush1.bf16.msra.mxu0 0
      %1871 = vmatprep.subr.bf16.mxu0 0
      %1872 = vmatpush1.bf16.msra.mxu0 %v1852
      %1873 = vmatprep.subr.bf16.mxu0 0
      %1874 = vmatpush2.bf16.msra.mxu0 0
      %1875 = vmatprep.subr.bf16.mxu0 0
      %1876 = vmatpush2.bf16.msra.mxu0 0
      %1877 = vmatprep.subr.bf16.mxu0 0
      %1878 = vmatpush2.bf16.msra.mxu0 0
      %1879 = vmatprep.subr.bf16.mxu0 0
      %1880 = vmatpush2.bf16.msra.mxu0 0
      %1881 = vmatprep.subr.bf16.mxu0 0
      %1882 = vmatpush2.bf16.msra.mxu0 0
      %1883 = vmatprep.subr.bf16.mxu0 0
      %1884 = vmatpush2.bf16.msra.mxu0 0
      %1885 = vmatprep.subr.bf16.mxu0 0
      %1886 = vmatpush2.bf16.msra.mxu0 0
      %1887 = vmatprep.subr.bf16.mxu0 0
      %1888 = vmatpush2.bf16.msra.mxu0 0
      %1889 = vmatprep.mubr.bf16.mxu0 0
      %1890 = vmatmul.mubr.bf16.gmra.mxu0 %v1855
      %v1891 = vpop.f32.mrf.mxu0
      %v1892 = vadd.f32 0.0, %v1891
      %v1893 = vpop.f32.mrf.mxu0
      %v1894 = vpop.f32.mrf.mxu0
      %v1895 = vadd.f32 0.0, %v1894
      %v1896 = vpop.f32.mrf.mxu0
      %1897 = vdwg.mxu0
      %v1898 = vpack.c.bf16 %v1754, %v1751
      %v1899 = vpack.c.bf16 %v1801, %v1798
      %v1900 = vpack.c.bf16 %v1848, %v1845
      %v1901 = vpack.c.bf16 %v1895, %v1892
      %s1902 = scalar_lea.vmem %s4, 48
      %v1903 = vld [vmem:[%s1902] sm:$0xff]
      %v1904 = vld [vmem:[%s1902 + $0x8] sm:$0xff]
      %1905 = vrot.lane.b32.xlu0 %v404, 104
      %v1906 = vpop.permute.xlu0 %1905
      %1907 = vrot.lane.b32.xlu0 %v404, 72
      %v1908 = vpop.permute.xlu0 %1907
      %v1910 = vsel %vm413, %v1906, 0
      %v1913 = vsel %vm413, %v1908, 0
      %1915 = vmatprep.subr.bf16.mxu0 0
      %1916 = vmatpush1.bf16.xpose.msra.mxu0 0
      %1917 = vmatprep.subr.bf16.mxu0 0
      %1918 = vmatpush1.bf16.xpose.msra.mxu0 0
      %1919 = vmatprep.subr.bf16.mxu0 0
      %1920 = vmatpush1.bf16.xpose.msra.mxu0 0
      %1921 = vmatprep.subr.bf16.mxu0 0
      %1922 = vmatpush1.bf16.xpose.msra.mxu0 0
      %1923 = vmatprep.subr.bf16.mxu0 0
      %1924 = vmatpush1.bf16.xpose.msra.mxu0 0
      %1925 = vmatprep.subr.bf16.mxu0 0
      %1926 = vmatpush1.bf16.xpose.msra.mxu0 0
      %1927 = vmatprep.subr.bf16.mxu0 0
      %1928 = vmatpush1.bf16.xpose.msra.mxu0 0
      %1929 = vmatprep.subr.bf16.mxu0 0
      %1930 = vmatpush1.bf16.xpose.msra.mxu0 %v1913
      %1931 = vmatprep.subr.bf16.mxu0 0
      %1932 = vmatpush2.bf16.xpose.msra.mxu0 0
      %1933 = vmatprep.subr.bf16.mxu0 0
      %1934 = vmatpush2.bf16.xpose.msra.mxu0 0
      %1935 = vmatprep.subr.bf16.mxu0 0
      %1936 = vmatpush2.bf16.xpose.msra.mxu0 0
      %1937 = vmatprep.subr.bf16.mxu0 0
      %1938 = vmatpush2.bf16.xpose.msra.mxu0 0
      %1939 = vmatprep.subr.bf16.mxu0 0
      %1940 = vmatpush2.bf16.xpose.msra.mxu0 0
      %1941 = vmatprep.subr.bf16.mxu0 0
      %1942 = vmatpush2.bf16.xpose.msra.mxu0 0
      %1943 = vmatprep.subr.bf16.mxu0 0
      %1944 = vmatpush2.bf16.xpose.msra.mxu0 0
      %1945 = vmatprep.subr.bf16.mxu0 0
      %1946 = vmatpush2.bf16.xpose.msra.mxu0 0
      %1947 = vmatprep.mubr.bf16.mxu0 0
      %1948 = vmatmul.mubr.bf16.gmra.mxu0 %v1910
      %v1949 = vpop.f32.mrf.mxu0
      %v1950 = vadd.f32 %v1903, %v1949
      %v1951 = vpop.f32.mrf.mxu0
      %v1952 = vpop.f32.mrf.mxu0
      %v1953 = vadd.f32 %v1904, %v1952
      %v1954 = vpop.f32.mrf.mxu0
      %1955 = vdwg.mxu0
      %1956 = vrot.lane.b32.xlu0 %v405, 104
      %v1957 = vpop.permute.xlu0 %1956
      %1958 = vrot.lane.b32.xlu0 %v405, 72
      %v1959 = vpop.permute.xlu0 %1958
      %v1961 = vsel %vm413, %v1957, 0
      %v1964 = vsel %vm413, %v1959, 0
      %1966 = vmatprep.subr.bf16.mxu0 0
      %1967 = vmatpush1.bf16.xpose.msra.mxu0 0
      %1968 = vmatprep.subr.bf16.mxu0 0
      %1969 = vmatpush1.bf16.xpose.msra.mxu0 0
      %1970 = vmatprep.subr.bf16.mxu0 0
      %1971 = vmatpush1.bf16.xpose.msra.mxu0 0
      %1972 = vmatprep.subr.bf16.mxu0 0
      %1973 = vmatpush1.bf16.xpose.msra.mxu0 0
      %1974 = vmatprep.subr.bf16.mxu0 0
      %1975 = vmatpush1.bf16.xpose.msra.mxu0 0
      %1976 = vmatprep.subr.bf16.mxu0 0
      %1977 = vmatpush1.bf16.xpose.msra.mxu0 0
      %1978 = vmatprep.subr.bf16.mxu0 0
      %1979 = vmatpush1.bf16.xpose.msra.mxu0 0
      %1980 = vmatprep.subr.bf16.mxu0 0
      %1981 = vmatpush1.bf16.xpose.msra.mxu0 %v1964
      %1982 = vmatprep.subr.bf16.mxu0 0
      %1983 = vmatpush2.bf16.xpose.msra.mxu0 0
      %1984 = vmatprep.subr.bf16.mxu0 0
      %1985 = vmatpush2.bf16.xpose.msra.mxu0 0
      %1986 = vmatprep.subr.bf16.mxu0 0
      %1987 = vmatpush2.bf16.xpose.msra.mxu0 0
      %1988 = vmatprep.subr.bf16.mxu0 0
      %1989 = vmatpush2.bf16.xpose.msra.mxu0 0
      %1990 = vmatprep.subr.bf16.mxu0 0
      %1991 = vmatpush2.bf16.xpose.msra.mxu0 0
      %1992 = vmatprep.subr.bf16.mxu0 0
      %1993 = vmatpush2.bf16.xpose.msra.mxu0 0
      %1994 = vmatprep.subr.bf16.mxu0 0
      %1995 = vmatpush2.bf16.xpose.msra.mxu0 0
      %1996 = vmatprep.subr.bf16.mxu0 0
      %1997 = vmatpush2.bf16.xpose.msra.mxu0 0
      %1998 = vmatprep.mubr.bf16.mxu0 0
      %1999 = vmatmul.mubr.bf16.gmra.mxu0 %v1961
      %v2000 = vpop.f32.mrf.mxu0
      %v2001 = vadd.f32 %v1903, %v2000
      %v2002 = vpop.f32.mrf.mxu0
      %v2003 = vpop.f32.mrf.mxu0
      %v2004 = vadd.f32 %v1904, %v2003
      %v2005 = vpop.f32.mrf.mxu0
      %2006 = vdwg.mxu0
      %2007 = vrot.lane.b32.xlu0 %v406, 104
      %v2008 = vpop.permute.xlu0 %2007
      %2009 = vrot.lane.b32.xlu0 %v406, 72
      %v2010 = vpop.permute.xlu0 %2009
      %v2012 = vsel %vm413, %v2008, 0
      %v2015 = vsel %vm413, %v2010, 0
      %2017 = vmatprep.subr.bf16.mxu0 0
      %2018 = vmatpush1.bf16.xpose.msra.mxu0 0
      %2019 = vmatprep.subr.bf16.mxu0 0
      %2020 = vmatpush1.bf16.xpose.msra.mxu0 0
      %2021 = vmatprep.subr.bf16.mxu0 0
      %2022 = vmatpush1.bf16.xpose.msra.mxu0 0
      %2023 = vmatprep.subr.bf16.mxu0 0
      %2024 = vmatpush1.bf16.xpose.msra.mxu0 0
      %2025 = vmatprep.subr.bf16.mxu0 0
      %2026 = vmatpush1.bf16.xpose.msra.mxu0 0
      %2027 = vmatprep.subr.bf16.mxu0 0
      %2028 = vmatpush1.bf16.xpose.msra.mxu0 0
      %2029 = vmatprep.subr.bf16.mxu0 0
      %2030 = vmatpush1.bf16.xpose.msra.mxu0 0
      %2031 = vmatprep.subr.bf16.mxu0 0
      %2032 = vmatpush1.bf16.xpose.msra.mxu0 %v2015
      %2033 = vmatprep.subr.bf16.mxu0 0
      %2034 = vmatpush2.bf16.xpose.msra.mxu0 0
      %2035 = vmatprep.subr.bf16.mxu0 0
      %2036 = vmatpush2.bf16.xpose.msra.mxu0 0
      %2037 = vmatprep.subr.bf16.mxu0 0
      %2038 = vmatpush2.bf16.xpose.msra.mxu0 0
      %2039 = vmatprep.subr.bf16.mxu0 0
      %2040 = vmatpush2.bf16.xpose.msra.mxu0 0
      %2041 = vmatprep.subr.bf16.mxu0 0
      %2042 = vmatpush2.bf16.xpose.msra.mxu0 0
      %2043 = vmatprep.subr.bf16.mxu0 0
      %2044 = vmatpush2.bf16.xpose.msra.mxu0 0
      %2045 = vmatprep.subr.bf16.mxu0 0
      %2046 = vmatpush2.bf16.xpose.msra.mxu0 0
      %2047 = vmatprep.subr.bf16.mxu0 0
      %2048 = vmatpush2.bf16.xpose.msra.mxu0 0
      %2049 = vmatprep.mubr.bf16.mxu0 0
      %2050 = vmatmul.mubr.bf16.gmra.mxu0 %v2012
      %v2051 = vpop.f32.mrf.mxu0
      %v2052 = vadd.f32 %v1903, %v2051
      %v2053 = vpop.f32.mrf.mxu0
      %v2054 = vpop.f32.mrf.mxu0
      %v2055 = vadd.f32 %v1904, %v2054
      %v2056 = vpop.f32.mrf.mxu0
      %2057 = vdwg.mxu0
      %2058 = vrot.lane.b32.xlu0 %v407, 104
      %v2059 = vpop.permute.xlu0 %2058
      %2060 = vrot.lane.b32.xlu0 %v407, 72
      %v2061 = vpop.permute.xlu0 %2060
      %v2063 = vsel %vm413, %v2059, 0
      %v2066 = vsel %vm413, %v2061, 0
      %2068 = vmatprep.subr.bf16.mxu0 0
      %2069 = vmatpush1.bf16.xpose.msra.mxu0 0
      %2070 = vmatprep.subr.bf16.mxu0 0
      %2071 = vmatpush1.bf16.xpose.msra.mxu0 0
      %2072 = vmatprep.subr.bf16.mxu0 0
      %2073 = vmatpush1.bf16.xpose.msra.mxu0 0
      %2074 = vmatprep.subr.bf16.mxu0 0
      %2075 = vmatpush1.bf16.xpose.msra.mxu0 0
      %2076 = vmatprep.subr.bf16.mxu0 0
      %2077 = vmatpush1.bf16.xpose.msra.mxu0 0
      %2078 = vmatprep.subr.bf16.mxu0 0
      %2079 = vmatpush1.bf16.xpose.msra.mxu0 0
      %2080 = vmatprep.subr.bf16.mxu0 0
      %2081 = vmatpush1.bf16.xpose.msra.mxu0 0
      %2082 = vmatprep.subr.bf16.mxu0 0
      %2083 = vmatpush1.bf16.xpose.msra.mxu0 %v2066
      %2084 = vmatprep.subr.bf16.mxu0 0
      %2085 = vmatpush2.bf16.xpose.msra.mxu0 0
      %2086 = vmatprep.subr.bf16.mxu0 0
      %2087 = vmatpush2.bf16.xpose.msra.mxu0 0
      %2088 = vmatprep.subr.bf16.mxu0 0
      %2089 = vmatpush2.bf16.xpose.msra.mxu0 0
      %2090 = vmatprep.subr.bf16.mxu0 0
      %2091 = vmatpush2.bf16.xpose.msra.mxu0 0
      %2092 = vmatprep.subr.bf16.mxu0 0
      %2093 = vmatpush2.bf16.xpose.msra.mxu0 0
      %2094 = vmatprep.subr.bf16.mxu0 0
      %2095 = vmatpush2.bf16.xpose.msra.mxu0 0
      %2096 = vmatprep.subr.bf16.mxu0 0
      %2097 = vmatpush2.bf16.xpose.msra.mxu0 0
      %2098 = vmatprep.subr.bf16.mxu0 0
      %2099 = vmatpush2.bf16.xpose.msra.mxu0 0
      %2100 = vmatprep.mubr.bf16.mxu0 0
      %2101 = vmatmul.mubr.bf16.gmra.mxu0 %v2063
      %v2102 = vpop.f32.mrf.mxu0
      %v2103 = vadd.f32 %v1903, %v2102
      %v2104 = vpop.f32.mrf.mxu0
      %v2105 = vpop.f32.mrf.mxu0
      %v2106 = vadd.f32 %v1904, %v2105
      %v2107 = vpop.f32.mrf.mxu0
      %2108 = vdwg.mxu0
      %v2109 = vadd.f32 %v1950, %v295
      %v2110 = vadd.f32 %v1953, %v296
      %v2111 = vadd.f32 %v2001, %v297
      %v2112 = vadd.f32 %v2004, %v298
      %v2113 = vadd.f32 %v2052, %v299
      %v2114 = vadd.f32 %v2055, %v300
      %v2115 = vadd.f32 %v2103, %v301
      %v2116 = vadd.f32 %v2106, %v302
      %v2117 = vsel %vm619, %v2109, -inf
      %2118 = vmax.xlane.f32.xlu0 %v2117
      %v2119 = vpop.xlane.xlu0 %2118
      %v2120 = vsel %vm619, %v2110, -inf
      %2121 = vmax.xlane.f32.xlu0 %v2120
      %v2122 = vpop.xlane.xlu0 %2121
      %v2123 = vsel %vm619, %v2111, -inf
      %2124 = vmax.xlane.f32.xlu0 %v2123
      %v2125 = vpop.xlane.xlu0 %2124
      %v2126 = vsel %vm619, %v2112, -inf
      %2127 = vmax.xlane.f32.xlu0 %v2126
      %v2128 = vpop.xlane.xlu0 %2127
      %v2129 = vsel %vm619, %v2113, -inf
      %2130 = vmax.xlane.f32.xlu0 %v2129
      %v2131 = vpop.xlane.xlu0 %2130
      %v2132 = vsel %vm619, %v2114, -inf
      %2133 = vmax.xlane.f32.xlu0 %v2132
      %v2134 = vpop.xlane.xlu0 %2133
      %v2135 = vsel %vm619, %v2115, -inf
      %2136 = vmax.xlane.f32.xlu0 %v2135
      %v2137 = vpop.xlane.xlu0 %2136
      %v2138 = vsel %vm619, %v2116, -inf
      %2139 = vmax.xlane.f32.xlu0 %v2138
      %v2140 = vpop.xlane.xlu0 %2139
      %v2141 = vsub.f32 %v2109, %v2119
      %v2142 = vsub.f32 %v2110, %v2122
      %v2143 = vsub.f32 %v2111, %v2125
      %v2144 = vsub.f32 %v2112, %v2128
      %v2145 = vsub.f32 %v2113, %v2131
      %v2146 = vsub.f32 %v2114, %v2134
      %v2147 = vsub.f32 %v2115, %v2137
      %v2148 = vsub.f32 %v2116, %v2140
      %v2149 = vmul.f32 %v2141, 1.442695
      %v2150 = vpow.pop %v2149
      %v2151 = vmul.f32 %v2142, 1.442695
      %v2152 = vpow.pop %v2151
      %v2153 = vmul.f32 %v2143, 1.442695
      %v2154 = vpow.pop %v2153
      %v2155 = vmul.f32 %v2144, 1.442695
      %v2156 = vpow.pop %v2155
      %v2157 = vmul.f32 %v2145, 1.442695
      %v2158 = vpow.pop %v2157
      %v2159 = vmul.f32 %v2146, 1.442695
      %v2160 = vpow.pop %v2159
      %v2161 = vmul.f32 %v2147, 1.442695
      %v2162 = vpow.pop %v2161
      %v2163 = vmul.f32 %v2148, 1.442695
      %v2164 = vpow.pop %v2163
      %v2165 = vsel %vm619, %v2150, 0.0
      %2166 = vadd.xlane.f32.xlu0 %v2165
      %v2167 = vpop.xlane.xlu0 %2166
      %v2168 = vsel %vm619, %v2152, 0.0
      %2169 = vadd.xlane.f32.xlu0 %v2168
      %v2170 = vpop.xlane.xlu0 %2169
      %v2171 = vsel %vm619, %v2154, 0.0
      %2172 = vadd.xlane.f32.xlu0 %v2171
      %v2173 = vpop.xlane.xlu0 %2172
      %v2174 = vsel %vm619, %v2156, 0.0
      %2175 = vadd.xlane.f32.xlu0 %v2174
      %v2176 = vpop.xlane.xlu0 %2175
      %v2177 = vsel %vm619, %v2158, 0.0
      %2178 = vadd.xlane.f32.xlu0 %v2177
      %v2179 = vpop.xlane.xlu0 %2178
      %v2180 = vsel %vm619, %v2160, 0.0
      %2181 = vadd.xlane.f32.xlu0 %v2180
      %v2182 = vpop.xlane.xlu0 %2181
      %v2183 = vsel %vm619, %v2162, 0.0
      %2184 = vadd.xlane.f32.xlu0 %v2183
      %v2185 = vpop.xlane.xlu0 %2184
      %v2186 = vsel %vm619, %v2164, 0.0
      %2187 = vadd.xlane.f32.xlu0 %v2186
      %v2188 = vpop.xlane.xlu0 %2187
      %v2189 = vrcp.pop %v2167
      %v2190 = vrcp.pop %v2170
      %v2191 = vrcp.pop %v2173
      %v2192 = vrcp.pop %v2176
      %v2193 = vrcp.pop %v2179
      %v2194 = vrcp.pop %v2182
      %v2195 = vrcp.pop %v2185
      %v2196 = vrcp.pop %v2188
      %v2197 = vmul.f32 %v2150, %v2189
      %v2198 = vmul.f32 %v2152, %v2190
      %v2199 = vmul.f32 %v2154, %v2191
      %v2200 = vmul.f32 %v2156, %v2192
      %v2201 = vmul.f32 %v2158, %v2193
      %v2202 = vmul.f32 %v2160, %v2194
      %v2203 = vmul.f32 %v2162, %v2195
      %v2204 = vmul.f32 %v2164, %v2196
      %v2205 = vpack.c.bf16 %v2198, %v2197
      %v2206 = vpack.c.bf16 %v2200, %v2199
      %v2207 = vpack.c.bf16 %v2202, %v2201
      %v2208 = vpack.c.bf16 %v2204, %v2203
      %2209 = vrot.lane.b32.xlu0 %v404, 40
      %v2210 = vpop.permute.xlu0 %2209
      %v2213 = vsel %vm619, %v2205, 0
      %2215 = vmatprep.subr.bf16.mxu0 0
      %2216 = vmatpush1.bf16.msra.mxu0 0
      %2217 = vmatprep.subr.bf16.mxu0 0
      %2218 = vmatpush1.bf16.msra.mxu0 0
      %2219 = vmatprep.subr.bf16.mxu0 0
      %2220 = vmatpush1.bf16.msra.mxu0 0
      %2221 = vmatprep.subr.bf16.mxu0 0
      %2222 = vmatpush1.bf16.msra.mxu0 0
      %2223 = vmatprep.subr.bf16.mxu0 0
      %2224 = vmatpush1.bf16.msra.mxu0 0
      %2225 = vmatprep.subr.bf16.mxu0 0
      %2226 = vmatpush1.bf16.msra.mxu0 0
      %2227 = vmatprep.subr.bf16.mxu0 0
      %2228 = vmatpush1.bf16.msra.mxu0 0
      %2229 = vmatprep.subr.bf16.mxu0 0
      %2230 = vmatpush1.bf16.msra.mxu0 %v2210
      %2231 = vmatprep.subr.bf16.mxu0 0
      %2232 = vmatpush2.bf16.msra.mxu0 0
      %2233 = vmatprep.subr.bf16.mxu0 0
      %2234 = vmatpush2.bf16.msra.mxu0 0
      %2235 = vmatprep.subr.bf16.mxu0 0
      %2236 = vmatpush2.bf16.msra.mxu0 0
      %2237 = vmatprep.subr.bf16.mxu0 0
      %2238 = vmatpush2.bf16.msra.mxu0 0
      %2239 = vmatprep.subr.bf16.mxu0 0
      %2240 = vmatpush2.bf16.msra.mxu0 0
      %2241 = vmatprep.subr.bf16.mxu0 0
      %2242 = vmatpush2.bf16.msra.mxu0 0
      %2243 = vmatprep.subr.bf16.mxu0 0
      %2244 = vmatpush2.bf16.msra.mxu0 0
      %2245 = vmatprep.subr.bf16.mxu0 0
      %2246 = vmatpush2.bf16.msra.mxu0 0
      %2247 = vmatprep.mubr.bf16.mxu0 0
      %2248 = vmatmul.mubr.bf16.gmra.mxu0 %v2213
      %v2249 = vpop.f32.mrf.mxu0
      %v2250 = vadd.f32 0.0, %v2249
      %v2251 = vpop.f32.mrf.mxu0
      %v2252 = vpop.f32.mrf.mxu0
      %v2253 = vadd.f32 0.0, %v2252
      %v2254 = vpop.f32.mrf.mxu0
      %2255 = vdwg.mxu0
      %2256 = vrot.lane.b32.xlu0 %v405, 40
      %v2257 = vpop.permute.xlu0 %2256
      %v2260 = vsel %vm619, %v2206, 0
      %2262 = vmatprep.subr.bf16.mxu0 0
      %2263 = vmatpush1.bf16.msra.mxu0 0
      %2264 = vmatprep.subr.bf16.mxu0 0
      %2265 = vmatpush1.bf16.msra.mxu0 0
      %2266 = vmatprep.subr.bf16.mxu0 0
      %2267 = vmatpush1.bf16.msra.mxu0 0
      %2268 = vmatprep.subr.bf16.mxu0 0
      %2269 = vmatpush1.bf16.msra.mxu0 0
      %2270 = vmatprep.subr.bf16.mxu0 0
      %2271 = vmatpush1.bf16.msra.mxu0 0
      %2272 = vmatprep.subr.bf16.mxu0 0
      %2273 = vmatpush1.bf16.msra.mxu0 0
      %2274 = vmatprep.subr.bf16.mxu0 0
      %2275 = vmatpush1.bf16.msra.mxu0 0
      %2276 = vmatprep.subr.bf16.mxu0 0
      %2277 = vmatpush1.bf16.msra.mxu0 %v2257
      %2278 = vmatprep.subr.bf16.mxu0 0
      %2279 = vmatpush2.bf16.msra.mxu0 0
      %2280 = vmatprep.subr.bf16.mxu0 0
      %2281 = vmatpush2.bf16.msra.mxu0 0
      %2282 = vmatprep.subr.bf16.mxu0 0
      %2283 = vmatpush2.bf16.msra.mxu0 0
      %2284 = vmatprep.subr.bf16.mxu0 0
      %2285 = vmatpush2.bf16.msra.mxu0 0
      %2286 = vmatprep.subr.bf16.mxu0 0
      %2287 = vmatpush2.bf16.msra.mxu0 0
      %2288 = vmatprep.subr.bf16.mxu0 0
      %2289 = vmatpush2.bf16.msra.mxu0 0
      %2290 = vmatprep.subr.bf16.mxu0 0
      %2291 = vmatpush2.bf16.msra.mxu0 0
      %2292 = vmatprep.subr.bf16.mxu0 0
      %2293 = vmatpush2.bf16.msra.mxu0 0
      %2294 = vmatprep.mubr.bf16.mxu0 0
      %2295 = vmatmul.mubr.bf16.gmra.mxu0 %v2260
      %v2296 = vpop.f32.mrf.mxu0
      %v2297 = vadd.f32 0.0, %v2296
      %v2298 = vpop.f32.mrf.mxu0
      %v2299 = vpop.f32.mrf.mxu0
      %v2300 = vadd.f32 0.0, %v2299
      %v2301 = vpop.f32.mrf.mxu0
      %2302 = vdwg.mxu0
      %2303 = vrot.lane.b32.xlu0 %v406, 40
      %v2304 = vpop.permute.xlu0 %2303
      %v2307 = vsel %vm619, %v2207, 0
      %2309 = vmatprep.subr.bf16.mxu0 0
      %2310 = vmatpush1.bf16.msra.mxu0 0
      %2311 = vmatprep.subr.bf16.mxu0 0
      %2312 = vmatpush1.bf16.msra.mxu0 0
      %2313 = vmatprep.subr.bf16.mxu0 0
      %2314 = vmatpush1.bf16.msra.mxu0 0
      %2315 = vmatprep.subr.bf16.mxu0 0
      %2316 = vmatpush1.bf16.msra.mxu0 0
      %2317 = vmatprep.subr.bf16.mxu0 0
      %2318 = vmatpush1.bf16.msra.mxu0 0
      %2319 = vmatprep.subr.bf16.mxu0 0
      %2320 = vmatpush1.bf16.msra.mxu0 0
      %2321 = vmatprep.subr.bf16.mxu0 0
      %2322 = vmatpush1.bf16.msra.mxu0 0
      %2323 = vmatprep.subr.bf16.mxu0 0
      %2324 = vmatpush1.bf16.msra.mxu0 %v2304
      %2325 = vmatprep.subr.bf16.mxu0 0
      %2326 = vmatpush2.bf16.msra.mxu0 0
      %2327 = vmatprep.subr.bf16.mxu0 0
      %2328 = vmatpush2.bf16.msra.mxu0 0
      %2329 = vmatprep.subr.bf16.mxu0 0
      %2330 = vmatpush2.bf16.msra.mxu0 0
      %2331 = vmatprep.subr.bf16.mxu0 0
      %2332 = vmatpush2.bf16.msra.mxu0 0
      %2333 = vmatprep.subr.bf16.mxu0 0
      %2334 = vmatpush2.bf16.msra.mxu0 0
      %2335 = vmatprep.subr.bf16.mxu0 0
      %2336 = vmatpush2.bf16.msra.mxu0 0
      %2337 = vmatprep.subr.bf16.mxu0 0
      %2338 = vmatpush2.bf16.msra.mxu0 0
      %2339 = vmatprep.subr.bf16.mxu0 0
      %2340 = vmatpush2.bf16.msra.mxu0 0
      %2341 = vmatprep.mubr.bf16.mxu0 0
      %2342 = vmatmul.mubr.bf16.gmra.mxu0 %v2307
      %v2343 = vpop.f32.mrf.mxu0
      %v2344 = vadd.f32 0.0, %v2343
      %v2345 = vpop.f32.mrf.mxu0
      %v2346 = vpop.f32.mrf.mxu0
      %v2347 = vadd.f32 0.0, %v2346
      %v2348 = vpop.f32.mrf.mxu0
      %2349 = vdwg.mxu0
      %2350 = vrot.lane.b32.xlu0 %v407, 40
      %v2351 = vpop.permute.xlu0 %2350
      %v2354 = vsel %vm619, %v2208, 0
      %2356 = vmatprep.subr.bf16.mxu0 0
      %2357 = vmatpush1.bf16.msra.mxu0 0
      %2358 = vmatprep.subr.bf16.mxu0 0
      %2359 = vmatpush1.bf16.msra.mxu0 0
      %2360 = vmatprep.subr.bf16.mxu0 0
      %2361 = vmatpush1.bf16.msra.mxu0 0
      %2362 = vmatprep.subr.bf16.mxu0 0
      %2363 = vmatpush1.bf16.msra.mxu0 0
      %2364 = vmatprep.subr.bf16.mxu0 0
      %2365 = vmatpush1.bf16.msra.mxu0 0
      %2366 = vmatprep.subr.bf16.mxu0 0
      %2367 = vmatpush1.bf16.msra.mxu0 0
      %2368 = vmatprep.subr.bf16.mxu0 0
      %2369 = vmatpush1.bf16.msra.mxu0 0
      %2370 = vmatprep.subr.bf16.mxu0 0
      %2371 = vmatpush1.bf16.msra.mxu0 %v2351
      %2372 = vmatprep.subr.bf16.mxu0 0
      %2373 = vmatpush2.bf16.msra.mxu0 0
      %2374 = vmatprep.subr.bf16.mxu0 0
      %2375 = vmatpush2.bf16.msra.mxu0 0
      %2376 = vmatprep.subr.bf16.mxu0 0
      %2377 = vmatpush2.bf16.msra.mxu0 0
      %2378 = vmatprep.subr.bf16.mxu0 0
      %2379 = vmatpush2.bf16.msra.mxu0 0
      %2380 = vmatprep.subr.bf16.mxu0 0
      %2381 = vmatpush2.bf16.msra.mxu0 0
      %2382 = vmatprep.subr.bf16.mxu0 0
      %2383 = vmatpush2.bf16.msra.mxu0 0
      %2384 = vmatprep.subr.bf16.mxu0 0
      %2385 = vmatpush2.bf16.msra.mxu0 0
      %2386 = vmatprep.subr.bf16.mxu0 0
      %2387 = vmatpush2.bf16.msra.mxu0 0
      %2388 = vmatprep.mubr.bf16.mxu0 0
      %2389 = vmatmul.mubr.bf16.gmra.mxu0 %v2354
      %v2390 = vpop.f32.mrf.mxu0
      %v2391 = vadd.f32 0.0, %v2390
      %v2392 = vpop.f32.mrf.mxu0
      %v2393 = vpop.f32.mrf.mxu0
      %v2394 = vadd.f32 0.0, %v2393
      %v2395 = vpop.f32.mrf.mxu0
      %2396 = vdwg.mxu0
      %v2397 = vpack.c.bf16 %v2253, %v2250
      %v2398 = vpack.c.bf16 %v2300, %v2297
      %v2399 = vpack.c.bf16 %v2347, %v2344
      %v2400 = vpack.c.bf16 %v2394, %v2391
      %2405 = vrot.lane.b32.xlu0 %v1399, 8
      %v2406 = vpop.permute.xlu0 %2405
      %2407 = vrot.lane.b32.xlu0 %v1400, 8
      %v2408 = vpop.permute.xlu0 %2407
      %2409 = vrot.lane.b32.xlu0 %v1401, 8
      %v2410 = vpop.permute.xlu0 %2409
      %2411 = vrot.lane.b32.xlu0 %v1402, 8
      %v2412 = vpop.permute.xlu0 %2411
      %2417 = vrot.lane.b32.xlu0 %v1898, 16
      %v2418 = vpop.permute.xlu0 %2417
      %2419 = vrot.lane.b32.xlu0 %v1899, 16
      %v2420 = vpop.permute.xlu0 %2419
      %2421 = vrot.lane.b32.xlu0 %v1900, 16
      %v2422 = vpop.permute.xlu0 %2421
      %2423 = vrot.lane.b32.xlu0 %v1901, 16
      %v2424 = vpop.permute.xlu0 %2423
      %2429 = vrot.lane.b32.xlu0 %v2397, 24
      %v2430 = vpop.permute.xlu0 %2429
      %2431 = vrot.lane.b32.xlu0 %v2398, 24
      %v2432 = vpop.permute.xlu0 %2431
      %2433 = vrot.lane.b32.xlu0 %v2399, 24
      %v2434 = vpop.permute.xlu0 %2433
      %2435 = vrot.lane.b32.xlu0 %v2400, 24
      %v2436 = vpop.permute.xlu0 %2435
      %v2439 = vsel %vm413, %v900, %v2406
      %v2442 = vsel %vm413, %v901, %v2408
      %v2445 = vsel %vm413, %v902, %v2410
      %v2448 = vsel %vm413, %v903, %v2412
      %v2450 = vsel %vm619, %v2439, %v2418
      %v2452 = vsel %vm619, %v2442, %v2420
      %v2454 = vsel %vm619, %v2445, %v2422
      %v2456 = vsel %vm619, %v2448, %v2424
      %vm2457 = vcmask 195584
      %v2459 = vsel %vm2457, %v2450, %v2430
      %v2461 = vsel %vm2457, %v2452, %v2432
      %v2463 = vsel %vm2457, %v2454, %v2434
      %v2465 = vsel %vm2457, %v2456, %v2436
      %v2466 = vld [vmem:[%s5] sm:$0xf]
      %v2467 = vld [vmem:[%s5 + $0x4] sm:$0xf]
      %v2468 = vld [vmem:[%s5 + $0x8] sm:$0xf]
      %v2469 = vld [vmem:[%s5 + $0xc] sm:$0xf]
      %v2470 = vld [vmem:[%s6] sm:$0x1]
      %v2472 = vlaneseq
      %v2473 = vshrl.u32 %v2472, 7
      %v2474 = vsub.s32 0, %v2473
      %v2475 = vrot.slane %v2470, %v2474
      %v2481 = vunpack.c.l.b16 %v2466
      %v2482 = vunpack.c.l.b16 %v2467
      %v2483 = vunpack.c.l.b16 %v2468
      %v2484 = vunpack.c.l.b16 %v2469
      %v2485 = vpack.c.b16 %v2482, %v2481
      %v2486 = vpack.c.b16 %v2484, %v2483
      %v2489 = vsel %vm326, %v2459, 0
      %v2491 = vsel %vm326, %v2461, 0
      %v2493 = vsel %vm326, %v2463, 0
      %v2495 = vsel %vm326, %v2465, 0
      %2497 = vmatprep.subr.bf16.mxu0 0
      %2498 = vmatpush1.bf16.msra.mxu0 0
      %2499 = vmatprep.subr.bf16.mxu0 0
      %2500 = vmatpush1.bf16.msra.mxu0 0
      %2501 = vmatprep.subr.bf16.mxu0 0
      %2502 = vmatpush1.bf16.msra.mxu0 0
      %2503 = vmatprep.subr.bf16.mxu0 0
      %2504 = vmatpush1.bf16.msra.mxu0 0
      %2505 = vmatprep.subr.bf16.mxu0 0
      %2506 = vmatpush1.bf16.msra.mxu0 0
      %2507 = vmatprep.subr.bf16.mxu0 0
      %2508 = vmatpush1.bf16.msra.mxu0 0
      %2509 = vmatprep.subr.bf16.mxu0 0
      %2510 = vmatpush1.bf16.msra.mxu0 %v2486
      %2511 = vmatprep.subr.bf16.mxu0 0
      %2512 = vmatpush1.bf16.msra.mxu0 %v2485
      %2513 = vmatprep.subr.bf16.mxu0 0
      %2514 = vmatpush2.bf16.msra.mxu0 0
      %2515 = vmatprep.subr.bf16.mxu0 0
      %2516 = vmatpush2.bf16.msra.mxu0 0
      %2517 = vmatprep.subr.bf16.mxu0 0
      %2518 = vmatpush2.bf16.msra.mxu0 0
      %2519 = vmatprep.subr.bf16.mxu0 0
      %2520 = vmatpush2.bf16.msra.mxu0 0
      %2521 = vmatprep.subr.bf16.mxu0 0
      %2522 = vmatpush2.bf16.msra.mxu0 0
      %2523 = vmatprep.subr.bf16.mxu0 0
      %2524 = vmatpush2.bf16.msra.mxu0 0
      %2525 = vmatprep.subr.bf16.mxu0 0
      %2526 = vmatpush2.bf16.msra.mxu0 0
      %2527 = vmatprep.subr.bf16.mxu0 0
      %2528 = vmatpush2.bf16.msra.mxu0 0
      %2529 = vmatprep.mubr.bf16.mxu0 0
      %2530 = vmatmul.mubr.bf16.gmra.mxu0 %v2489
      %v2531 = vpop.f32.mrf.mxu0
      %v2532 = vadd.f32 %v2475, %v2531
      %v2533 = vpop.f32.mrf.mxu0
      %v2534 = vpop.f32.mrf.mxu0
      %v2535 = vadd.f32 %v2475, %v2534
      %v2536 = vpop.f32.mrf.mxu0
      %2537 = vmatprep.mubr.bf16.mxu0 0
      %2538 = vmatmul.mubr.bf16.gmra.mxu0 %v2491
      %v2539 = vpop.f32.mrf.mxu0
      %v2540 = vadd.f32 %v2475, %v2539
      %v2541 = vpop.f32.mrf.mxu0
      %v2542 = vpop.f32.mrf.mxu0
      %v2543 = vadd.f32 %v2475, %v2542
      %v2544 = vpop.f32.mrf.mxu0
      %2545 = vmatprep.mubr.bf16.mxu0 0
      %2546 = vmatmul.mubr.bf16.gmra.mxu0 %v2493
      %v2547 = vpop.f32.mrf.mxu0
      %v2548 = vadd.f32 %v2475, %v2547
      %v2549 = vpop.f32.mrf.mxu0
      %v2550 = vpop.f32.mrf.mxu0
      %v2551 = vadd.f32 %v2475, %v2550
      %v2552 = vpop.f32.mrf.mxu0
      %2553 = vmatprep.mubr.bf16.mxu0 0
      %2554 = vmatmul.mubr.bf16.gmra.mxu0 %v2495
      %v2555 = vpop.f32.mrf.mxu0
      %v2556 = vadd.f32 %v2475, %v2555
      %v2557 = vpop.f32.mrf.mxu0
      %v2558 = vpop.f32.mrf.mxu0
      %v2559 = vadd.f32 %v2475, %v2558
      %v2560 = vpop.f32.mrf.mxu0
      %2561 = vdwg.mxu0
      %2562 = vst.msk [vmem:[%s280] sm:$0xff] %vm326, %v2532
      %2563 = vst.msk [vmem:[%s280 + $0x8] sm:$0xff] %vm326, %v2535
      %2564 = vst.msk [vmem:[%s280 + $0x10] sm:$0xff] %vm326, %v2540
      %2565 = vst.msk [vmem:[%s280 + $0x18] sm:$0xff] %vm326, %v2543
      %2566 = vst.msk [vmem:[%s280 + $0x20] sm:$0xff] %vm326, %v2548
      %2567 = vst.msk [vmem:[%s280 + $0x28] sm:$0xff] %vm326, %v2551
      %2568 = vst.msk [vmem:[%s280 + $0x30] sm:$0xff] %vm326, %v2556
      %2569 = vst.msk [vmem:[%s280 + $0x38] sm:$0xff] %vm326, %v2559
      %s2570 = smul.u32 8, %s18
      %p2571 = scmp.lt.s32.totalorder %s2570, 15
      %s2572 = scalar_select %p2571, %s2570, 15
      %s2573 = smul.addr %s2572, 8
      %s2574 = scalar_lea.vmem %s7, %s2573
      // Predicated region
      $region49: #{tpu_custom_call.1} parent=47 // pred_check
        %p2575 = pneg %p188
      $region50: #{tpu_custom_call.1} parent=47 // pred_check_branch
        %2577 = sbr.rel (%p2575) target = $region52
      $region51: #{tpu_custom_call.1} parent=47 // pred_region
        %s2578 = smul.u32 8, %s18
      $region52: #{tpu_custom_call.1} parent=47 // pred_fallthru
        _
    $region48: #{tpu_custom_call.1} parent=5 // pred_fallthru
      _
    %p2579 = scmp.le.s32.totalorder 2, %s13
    // Predicated region
    $region53: #{tpu_custom_call.1} parent=5 // pred_check
      %p2580 = pneg %p2579
    $region54: #{tpu_custom_call.1} parent=5 // pred_check_branch
      %2582 = sbr.rel (%p2580) target = $region56
    $region55: #{tpu_custom_call.1} parent=5 // pred_region
      %s2583 = ssub.s32 %s13, 2
      // Predicated region
      $region57: #{tpu_custom_call.1} parent=55 // pred_check
        %p2584 = pneg %p194
      $region58: #{tpu_custom_call.1} parent=55 // pred_check_branch
        %2586 = sbr.rel (%p2584) target = $region60
      $region59: #{tpu_custom_call.1} parent=55 // pred_region
        %s2587 = smul.u32 8, %s19
        %p2588 = scmp.lt.s32.totalorder %s2587, 15
        %s2589 = scalar_select %p2588, %s2587, 15
        %s2590 = smul.addr %s2589, 8
        %s2591 = scalar_lea.vmem %s7, %s2590
      $region60: #{tpu_custom_call.1} parent=55 // pred_fallthru
        _
    $region56: #{tpu_custom_call.1} parent=5 // pred_fallthru
      _
  $region6: #{tpu_custom_call.1} parent=0 // loop_footer
    %s17 = sadd.s32 1, %s13
  $region7: #{tpu_custom_call.1} parent=0 // loop_footer_branch
    %12 = sbr.rel target = $region3
  $region8: #{tpu_custom_call.1} parent=0 // loop_exit
    _

</llo_original>
